<compile_context>
chip_gen: v6e
topology: v6e:2x2x1
jax: 0.10.0
libtpu: 0.0.40
codegen_flags: <defaults>
</compile_context>

<pallas_src>
import functools

import jax
import jax.numpy as jnp
from jax import lax
from jax.experimental import pallas as pl
from jax.experimental.pallas import tpu as pltpu

BN_EPS = 1e-5
_LANE = 128


def _round_up(x, m):
    return (x + m - 1) // m * m


@functools.lru_cache(maxsize=None)
def _vmem_budget():
    """~80% of physical VMEM (capped at 100 MiB); safe fallback if query fails."""
    cap = 64 * 1024 * 1024
    try:
        info = pltpu.get_tpu_info()
        cap = int(getattr(info, "vmem_capacity_bytes", cap) or cap)
    except Exception:
        pass
    return int(min(cap * 4 // 5, 100 * 1024 * 1024))


# --------------------------- Pallas kernels ----------------------------------


def _gemm_stats_kernel(x_ref, w_ref, y_ref, stats_ref, acc_ref, *, tk):
    """Tiled GEMM y = x @ w (bf16 in, f32 MXU accumulation, bf16 out) plus
    per-(M tile, channel) sum / sum-of-squares side outputs for streamed BN.

    Grid is (ni, mi, ki).  The weight block is the full (Kp, tn) panel with a
    constant-per-ni index_map, so it stays resident in VMEM across all M/K
    steps of that N tile and is sliced here with pl.ds."""
    ki = pl.program_id(2)

    @pl.when(ki == 0)
    def _():
        acc_ref[...] = jnp.zeros_like(acc_ref)

    k0 = pl.multiple_of(ki * tk, tk)
    acc_ref[...] += jnp.dot(x_ref[...], w_ref[pl.ds(k0, tk), :],
                            preferred_element_type=jnp.float32)

    @pl.when(ki == pl.num_programs(2) - 1)
    def _():
        acc = acc_ref[...]                                    # f32 (tm, tn)
        y_ref[...] = acc.astype(y_ref.dtype)                  # bf16 writeback
        col_sum = jnp.sum(acc, axis=0, keepdims=True)         # (1, tn) f32
        col_sumsq = jnp.sum(acc * acc, axis=0, keepdims=True)
        stats_ref[...] = jnp.concatenate([col_sum, col_sumsq], axis=0)[None]


def _bn_act_kernel(y_ref, scale_ref, shift_ref, o_ref, *, relu):
    out = y_ref[...].astype(jnp.float32) * scale_ref[...] + shift_ref[...]
    if relu:
        out = jnp.maximum(out, 0.0)
    o_ref[...] = out.astype(o_ref.dtype)


def _bn_add_relu_kernel(ya_ref, sa_ref, fa_ref, yb_ref, sb_ref, fb_ref, o_ref):
    a = ya_ref[...].astype(jnp.float32) * sa_ref[...] + fa_ref[...]
    b = yb_ref[...].astype(jnp.float32) * sb_ref[...] + fb_ref[...]
    o_ref[...] = jnp.maximum(a + b, 0.0).astype(o_ref.dtype)


# --------------------------- wrappers -----------------------------------------


def _pick_m_tile(m):
    """Big enough to amortize per-step overhead, small enough for VMEM, and
    (when there is enough work) >= 2 tiles so both v7x TensorCores run."""
    if m > 512:
        tm = 512
    else:
        tm = max(128, _round_up(m, 256) // 2)
    return tm, _round_up(m, tm)


def _pick_bn_tile(mp, cp):
    """Largest M tile for the mem-bound BN passes that fits the VMEM budget."""
    budget = _vmem_budget()
    for cand in (2048, 1024, 512, 256, 128):
        if mp % cand == 0 and cand * cp * 20 <= budget:
            return cand
    return 128


def _gemm_with_stats(patches, w2d, tm):
    """patches (Mp, Kp) bf16, w2d (Kp, Cp) bf16 -> y (Mp, Cp) bf16,
    per-channel sum / sum-of-squares (Cp,) f32."""
    mp, kp = patches.shape
    _, cp = w2d.shape

    tk = _LANE
    for cand in (512, 384, 256, 128):
        if kp % cand == 0:
            tk = cand
            break
    tn = 256 if cp % 256 == 0 else _LANE          # MXU-native 256 on v6e/v7x
    num_m, num_n, num_k = mp // tm, cp // tn, kp // tk

    y2d, stats = pl.pallas_call(
        functools.partial(_gemm_stats_kernel, tk=tk),
        out_shape=(jax.ShapeDtypeStruct((mp, cp), jnp.bfloat16),
                   jax.ShapeDtypeStruct((num_m, 2, cp), jnp.float32)),
        grid_spec=pltpu.PrefetchScalarGridSpec(
            num_scalar_prefetch=0,
            grid=(num_n, num_m, num_k),
            in_specs=[
                # activation panel: re-fetched per (mi, ki)
                pl.BlockSpec((tm, tk), lambda ni, mi, ki: (mi, ki)),
                # full-K weight panel: VMEM-resident across mi/ki for each ni
                pl.BlockSpec((kp, tn), lambda ni, mi, ki: (0, ni)),
            ],
            out_specs=[
                pl.BlockSpec((tm, tn), lambda ni, mi, ki: (mi, ni)),
                pl.BlockSpec((1, 2, tn), lambda ni, mi, ki: (mi, 0, ni)),
            ],
            scratch_shapes=[pltpu.VMEM((tm, tn), jnp.float32)]),
        compiler_params=pltpu.CompilerParams(
            dimension_semantics=("parallel", "parallel", "arbitrary"),
            vmem_limit_bytes=_vmem_budget()),
    )(patches, w2d)

    col_sum = jnp.sum(stats[:, 0, :], axis=0)
    col_sumsq = jnp.sum(stats[:, 1, :], axis=0)
    return y2d, col_sum, col_sumsq


def _conv_bn_stats(x_nhwc, weight, gamma, beta, *, stride, padding, dilation):
    """Conv2d(bias=False) in NHWC as a tiled bf16 GEMM; training-mode BatchNorm2d
    batch statistics folded into per-channel (scale, shift).  Returns the raw conv
    output in padded (Mp, Cp) bf16 GEMM layout plus scale/shift and shape meta."""
    n, h, w, c_in = x_nhwc.shape
    c_out, _, kh, kw = weight.shape

    if kh == 1 and kw == 1:
        # 1x1 conv: no im2col, just a (strided) reshape to (M, C_in).
        # TODO(synk): stream the stride-s rows straight from x with a strided
        # index_map / pl.ds instead of this XLA strided-slice copy.
        xs = x_nhwc[:, ::stride, ::stride, :] if stride > 1 else x_nhwc
        _, h_out, w_out, _ = xs.shape
        patches = xs.reshape(n * h_out * w_out, c_in)
        w2d = weight.reshape(c_out, c_in).T
        k = c_in
    else:
        # TODO(synk): stream the kh*kw taps as extra K panels straight from the
        # padded NHWC activation (fusing the producer's BN+ReLU) instead of
        # materializing im2col in HBM.
        h_out = (h + 2 * padding - dilation * (kh - 1) - 1) // stride + 1
        w_out = (w + 2 * padding - dilation * (kw - 1) - 1) // stride + 1
        x_pad = jnp.pad(x_nhwc,
                        ((0, 0), (padding, padding), (padding, padding), (0, 0)))
        cols = []
        for i in range(kh):
            for j in range(kw):
                hi, wj = i * dilation, j * dilation
                cols.append(
                    x_pad[:, hi:hi + (h_out - 1) * stride + 1:stride,
                             wj:wj + (w_out - 1) * stride + 1:stride, :])
        patches = jnp.concatenate(cols, axis=-1)          # features (kh, kw, C)
        patches = patches.reshape(n * h_out * w_out, kh * kw * c_in)
        # (C_out, C_in, kh, kw) -> (kh, kw, C_in, C_out): matches patch K order.
        w2d = jnp.transpose(weight, (2, 3, 1, 0)).reshape(kh * kw * c_in, c_out)
        k = kh * kw * c_in

    m = patches.shape[0]
    tm, mp = _pick_m_tile(m)
    kp = _round_up(k, _LANE)
    cp = _round_up(c_out, _LANE)

    patches = jnp.pad(patches.astype(jnp.bfloat16), ((0, mp - m), (0, kp - k)))
    w2d = jnp.pad(w2d.astype(jnp.bfloat16), ((0, kp - k), (0, cp - c_out)))

    y2d, col_sum, col_sumsq = _gemm_with_stats(patches, w2d, tm)

    # Training-mode BatchNorm2d: biased batch stats over (N, H, W) == the M rows.
    # Zero-padded rows/channels contribute nothing to the sums; divide by real M.
    # TODO(synk): use shifted/compensated sums if E[y^2]-E[y]^2 cancellation ever
    # matters for real (large-mean) activations.
    mean = col_sum / m
    var = jnp.maximum(col_sumsq / m - mean * mean, 0.0)
    gamma_p = jnp.pad(gamma.astype(jnp.float32), (0, cp - c_out))
    beta_p = jnp.pad(beta.astype(jnp.float32), (0, cp - c_out))
    scale = gamma_p * lax.rsqrt(var + BN_EPS)
    shift = beta_p - mean * scale
    return (y2d, scale.reshape(1, cp), shift.reshape(1, cp),
            (n, h_out, w_out, m, c_out))


def _bn_apply(y2d, scale, shift, *, relu, out_dtype):
    mp, cp = y2d.shape
    tm = _pick_bn_tile(mp, cp)
    return pl.pallas_call(
        functools.partial(_bn_act_kernel, relu=relu),
        out_shape=jax.ShapeDtypeStruct((mp, cp), out_dtype),
        grid_spec=pltpu.PrefetchScalarGridSpec(
            num_scalar_prefetch=0,
            grid=(mp // tm,),
            in_specs=[pl.BlockSpec((tm, cp), lambda mi: (mi, 0)),
                      pl.BlockSpec((1, cp), lambda mi: (0, 0)),
                      pl.BlockSpec((1, cp), lambda mi: (0, 0))],
            out_specs=pl.BlockSpec((tm, cp), lambda mi: (mi, 0))),
        compiler_params=pltpu.CompilerParams(
            dimension_semantics=("parallel",),
            vmem_limit_bytes=_vmem_budget()),
    )(y2d, scale, shift)


def _bn_add_relu(ya, sa, fa, yb, sb, fb, *, out_dtype):
    mp, cp = ya.shape
    tm = _pick_bn_tile(mp, cp)
    return pl.pallas_call(
        _bn_add_relu_kernel,
        out_shape=jax.ShapeDtypeStruct((mp, cp), out_dtype),
        grid_spec=pltpu.PrefetchScalarGridSpec(
            num_scalar_prefetch=0,
            grid=(mp // tm,),
            in_specs=[pl.BlockSpec((tm, cp), lambda mi: (mi, 0)),
                      pl.BlockSpec((1, cp), lambda mi: (0, 0)),
                      pl.BlockSpec((1, cp), lambda mi: (0, 0)),
                      pl.BlockSpec((tm, cp), lambda mi: (mi, 0)),
                      pl.BlockSpec((1, cp), lambda mi: (0, 0)),
                      pl.BlockSpec((1, cp), lambda mi: (0, 0))],
            out_specs=pl.BlockSpec((tm, cp), lambda mi: (mi, 0))),
        compiler_params=pltpu.CompilerParams(
            dimension_semantics=("parallel",),
            vmem_limit_bytes=_vmem_budget()),
    )(ya, sa, fa, yb, sb, fb)


@functools.partial(jax.jit, static_argnames=("stride", "dilation"))
def bottleneck_psp_forward(x_nchw, params, *, stride=1, dilation=1):
    """Forward of BottleNeckPSP (batch_norm=True path, training-mode BN). x: NCHW."""
    dilation = max(1, dilation)
    # Cast to bf16 BEFORE the layout transpose so the HBM-bound data movement
    # runs at half the traffic; the GEMMs consume bf16 anyway.
    x = jnp.transpose(x_nchw.astype(jnp.bfloat16), (0, 2, 3, 1))   # NHWC once

    # ---- conv branch: 1x1 reduce -> BN -> ReLU
    y1, sc1, of1, (n, h1, w1, m1, c1) = _conv_bn_stats(
        x, params["w_reduce"], params["g_reduce"], params["b_reduce"],
        stride=1, padding=0, dilation=1)
    a1 = _bn_apply(y1, sc1, of1, relu=True, out_dtype=jnp.bfloat16)
    a1 = a1[:m1, :c1].reshape(n, h1, w1, c1)

    # ---- dilated / strided 3x3 -> BN -> ReLU
    y2, sc2, of2, (_, h2, w2, m2, c2) = _conv_bn_stats(
        a1, params["w_3x3"], params["g_3x3"], params["b_3x3"],
        stride=stride, padding=dilation, dilation=dilation)
    a2 = _bn_apply(y2, sc2, of2, relu=True, out_dtype=jnp.bfloat16)
    a2 = a2[:m2, :c2].reshape(n, h2, w2, c2)

    # ---- 1x1 increase -> BN (normalization deferred to the fused add kernel)
    y3, sc3, of3, (_, h3, w3, m3, c3) = _conv_bn_stats(
        a2, params["w_increase"], params["g_increase"], params["b_increase"],
        stride=1, padding=0, dilation=1)

    # ---- residual branch: strided 1x1 proj -> BN (also deferred)
    y4, sc4, of4, _ = _conv_bn_stats(
        x, params["w_proj"], params["g_proj"], params["b_proj"],
        stride=stride, padding=0, dilation=1)

    # ---- fused BN(conv) + BN(residual) + add + final ReLU
    out2d = _bn_add_relu(y3, sc3, of3, y4, sc4, of4, out_dtype=jnp.float32)
    out = out2d[:m3, :c3].reshape(n, h3, w3, c3)
    return jnp.transpose(out, (0, 3, 1, 2))                       # back to NCHW


# --------------------------- pure-JAX reference -------------------------------


def _conv_bn_ref(x, w, gamma, beta, stride, padding, dilation, relu):
    y = lax.conv_general_dilated(
        x.astype(jnp.bfloat16), w.astype(jnp.bfloat16),
        window_strides=(stride, stride),
        padding=[(padding, padding), (padding, padding)],
        rhs_dilation=(dilation, dilation),
        dimension_numbers=("NCHW", "OIHW", "NCHW"),
        preferred_element_type=jnp.float32)
    mean = jnp.mean(y, axis=(0, 2, 3), keepdims=True)
    var = jnp.mean((y - mean) ** 2, axis=(0, 2, 3), keepdims=True)
    out = ((y - mean) * lax.rsqrt(var + BN_EPS) * gamma.reshape(1, -1, 1, 1)
           + beta.reshape(1, -1, 1, 1))
    return jnp.maximum(out, 0.0) if relu else out


def _bottleneck_ref(x, params, stride, dilation):
    dilation = max(1, dilation)
    a1 = _conv_bn_ref(x, params["w_reduce"], params["g_reduce"],
                      params["b_reduce"], 1, 0, 1, True)
    a2 = _conv_bn_ref(a1, params["w_3x3"], params["g_3x3"],
                      params["b_3x3"], stride, dilation, dilation, True)
    a3 = _conv_bn_ref(a2, params["w_increase"], params["g_increase"],
                      params["b_increase"], 1, 0, 1, False)
    r = _conv_bn_ref(x, params["w_proj"], params["g_proj"],
                     params["b_proj"], stride, 0, 1, False)
    return jnp.maximum(a3 + r, 0.0)


if __name__ == "__main__":
    key = jax.random.PRNGKey(0)
    N, C_IN, H, W = 2, 16, 16, 16
    C_MID, C_OUT = 8, 32

    keys = jax.random.split(key, 13)

    def conv_w(k, co, ci, kh, kw):
        return (jax.random.normal(k, (co, ci, kh, kw), jnp.float32)
                * (ci * kh * kw) ** -0.5)

    params = {
        "w_reduce":   conv_w(keys[0], C_MID, C_IN, 1, 1),
        "g_reduce":   1.0 + 0.1 * jax.random.normal(keys[1], (C_MID,), jnp.float32),
        "b_reduce":   0.1 * jax.random.normal(keys[2], (C_MID,), jnp.float32),
        "w_3x3":      conv_w(keys[3], C_MID, C_MID, 3, 3),
        "g_3x3":      1.0 + 0.1 * jax.random.normal(keys[4], (C_MID,), jnp.float32),
        "b_3x3":      0.1 * jax.random.normal(keys[5], (C_MID,), jnp.float32),
        "w_increase": conv_w(keys[6], C_OUT, C_MID, 1, 1),
        "g_increase": 1.0 + 0.1 * jax.random.normal(keys[7], (C_OUT,), jnp.float32),
        "b_increase": 0.1 * jax.random.normal(keys[8], (C_OUT,), jnp.float32),
        "w_proj":     conv_w(keys[9], C_OUT, C_IN, 1, 1),
        "g_proj":     1.0 + 0.1 * jax.random.normal(keys[10], (C_OUT,), jnp.float32),
        "b_proj":     0.1 * jax.random.normal(keys[11], (C_OUT,), jnp.float32),
    }
    x = jax.random.normal(keys[12], (N, C_IN, H, W), dtype=jnp.float32)

    for stride, dilation in ((1, 2), (2, 1)):
        out = jax.block_until_ready(
            bottleneck_psp_forward(x, params, stride=stride, dilation=dilation))
        ref = _bottleneck_ref(x, params, stride, dilation)
        assert out.shape == ref.shape, (out.shape, ref.shape)
        err = float(jnp.max(jnp.abs(out - ref)))
        # bf16 storage of every conv output adds ~1 bf16 ulp per stage vs. the
        # f32-intermediate reference -> relaxed tolerance.
        assert jnp.allclose(out, ref, atol=4e-2, rtol=4e-2), (
            f"mismatch stride={stride} dilation={dilation} max_abs_err={err}")
    print("KERNEL_OK")
</pallas_src>

<mosaic_0001>
module attributes {stable_mosaic.version = 11 : i64} {
  func.func @_gemm_stats_kernel(%arg0: i32, %arg1: i32, %arg2: i32, %arg3: memref<256x128xbf16, #tpu.memory_space<vmem>>, %arg4: memref<128x128xbf16, #tpu.memory_space<vmem>>, %arg5: memref<256x128xbf16, #tpu.memory_space<vmem>>, %arg6: memref<1x2x128xf32, #tpu.memory_space<vmem>>, %arg7: memref<256x128xf32, #tpu.memory_space<vmem>>) attributes {dimension_semantics = [#tpu.dimension_semantics<parallel>, #tpu.dimension_semantics<parallel>, #tpu.dimension_semantics<arbitrary>], iteration_bounds = array<i64: 1, 2, 1>, scalar_prefetch = 0 : i64, scratch_operands = 1 : i64, tpu.core_type = #tpu.core_type<tc>, window_params = [{transform_indices = @transform_0, window_bounds = array<i64: 256, 128>}, {transform_indices = @transform_1, window_bounds = array<i64: 128, 128>}, {transform_indices = @transform_2, window_bounds = array<i64: 256, 128>}, {transform_indices = @transform_3, window_bounds = array<i64: 1, 2, 128>}]} {
    %c0_i32 = arith.constant 0 : i32
    %0 = arith.cmpi eq, %arg2, %c0_i32 : i32
    %1 = arith.extui %0 : i1 to i32
    %c0_i32_0 = arith.constant 0 : i32
    %2 = arith.cmpi ne, %1, %c0_i32_0 : i32
    scf.if %2 {
      %cst_9 = arith.constant 0.000000e+00 : f32
      %15 = vector.broadcast %cst_9 : f32 to vector<256x128xf32>
      %c0_10 = arith.constant 0 : index
      %c0_11 = arith.constant 0 : index
      %16 = vector.load %arg7[%c0_10, %c0_11] : memref<256x128xf32, #tpu.memory_space<vmem>>, vector<256x128xf32>
      tpu.vector_store %arg7[%c0_10, %c0_11], %15 {strides = array<i32>} : memref<256x128xf32, #tpu.memory_space<vmem>>, vector<256x128xf32>,
    } else {
    }
    %c128_i32 = arith.constant 128 : i32
    %3 = arith.muli %arg2, %c128_i32 : i32
    %4 = tpu.assume_multiple %3, 128 : i32
    %c0 = arith.constant 0 : index
    %c0_1 = arith.constant 0 : index
    %5 = vector.load %arg7[%c0, %c0_1] : memref<256x128xf32, #tpu.memory_space<vmem>>, vector<256x128xf32>
    %c0_2 = arith.constant 0 : index
    %c0_3 = arith.constant 0 : index
    %6 = vector.load %arg3[%c0_2, %c0_3] : memref<256x128xbf16, #tpu.memory_space<vmem>>, vector<256x128xbf16>
    %7 = arith.index_cast %4 : i32 to index
    %c0_4 = arith.constant 0 : index
    %8 = vector.load %arg4[%7, %c0_4] : memref<128x128xbf16, #tpu.memory_space<vmem>>, vector<128x128xbf16>
    %cst = arith.constant dense<0.000000e+00> : vector<256x128xf32>
    %9 = tpu.matmul %6, %8, %cst {dimension_numbers = #tpu.dot_dimension_numbers<[1], [0], [0], [1], [0, 0, 1, 1], [], []>} : vector<256x128xbf16>, vector<128x128xbf16>, vector<256x128xf32> -> vector<256x128xf32>
    %10 = arith.addf %5, %9 : vector<256x128xf32>
    %c0_5 = arith.constant 0 : index
    %c0_6 = arith.constant 0 : index
    %11 = vector.load %arg7[%c0_5, %c0_6] : memref<256x128xf32, #tpu.memory_space<vmem>>, vector<256x128xf32>
    tpu.vector_store %arg7[%c0_5, %c0_6], %10 {strides = array<i32>} : memref<256x128xf32, #tpu.memory_space<vmem>>, vector<256x128xf32>,
    %c0_i32_7 = arith.constant 0 : i32
    %12 = arith.cmpi eq, %arg2, %c0_i32_7 : i32
    %13 = arith.extui %12 : i1 to i32
    %c0_i32_8 = arith.constant 0 : i32
    %14 = arith.cmpi ne, %13, %c0_i32_8 : i32
    scf.if %14 {
      %c0_9 = arith.constant 0 : index
      %c0_10 = arith.constant 0 : index
      %15 = vector.load %arg7[%c0_9, %c0_10] : memref<256x128xf32, #tpu.memory_space<vmem>>, vector<256x128xf32>
      %16 = arith.truncf %15 : vector<256x128xf32> to vector<256x128xbf16>
      %c0_11 = arith.constant 0 : index
      %c0_12 = arith.constant 0 : index
      %17 = vector.load %arg5[%c0_11, %c0_12] : memref<256x128xbf16, #tpu.memory_space<vmem>>, vector<256x128xbf16>
      tpu.vector_store %arg5[%c0_11, %c0_12], %16 {strides = array<i32>} : memref<256x128xbf16, #tpu.memory_space<vmem>>, vector<256x128xbf16>,
      %cst_13 = arith.constant dense<0.000000e+00> : vector<128xf32>
      %18 = vector.multi_reduction <add>, %15, %cst_13 [0] : vector<256x128xf32> to vector<128xf32>
      %19 = vector.shape_cast %18 : vector<128xf32> to vector<1x128xf32>
      %20 = arith.mulf %15, %15 : vector<256x128xf32>
      %cst_14 = arith.constant dense<0.000000e+00> : vector<128xf32>
      %21 = vector.multi_reduction <add>, %20, %cst_14 [0] : vector<256x128xf32> to vector<128xf32>
      %22 = vector.shape_cast %21 : vector<128xf32> to vector<1x128xf32>
      %23 = tpu.concatenate %19, %22 in 0 : vector<1x128xf32>, vector<1x128xf32> -> vector<2x128xf32>
      %24 = vector.shape_cast %23 : vector<2x128xf32> to vector<1x2x128xf32>
      %c0_15 = arith.constant 0 : index
      %c0_16 = arith.constant 0 : index
      %c0_17 = arith.constant 0 : index
      %25 = vector.load %arg6[%c0_15, %c0_16, %c0_17] : memref<1x2x128xf32, #tpu.memory_space<vmem>>, vector<1x2x128xf32>
      tpu.vector_store %arg6[%c0_15, %c0_16, %c0_17], %24 {strides = array<i32>} : memref<1x2x128xf32, #tpu.memory_space<vmem>>, vector<1x2x128xf32>,
    } else {
    }
    return
  }
  func.func @transform_0(%arg0: i32, %arg1: i32, %arg2: i32) -> (i32, i32) {
    %c0_i32 = arith.constant 0 : i32
    return %arg1, %arg2 : i32, i32
  }
  func.func @transform_1(%arg0: i32, %arg1: i32, %arg2: i32) -> (i32, i32) {
    %c0_i32 = arith.constant 0 : i32
    %c0_i32_0 = arith.constant 0 : i32
    return %c0_i32, %arg0 : i32, i32
  }
  func.func @transform_2(%arg0: i32, %arg1: i32, %arg2: i32) -> (i32, i32) {
    %c0_i32 = arith.constant 0 : i32
    return %arg1, %arg0 : i32, i32
  }
  func.func @transform_3(%arg0: i32, %arg1: i32, %arg2: i32) -> (i32, i32, i32) {
    %c0_i32 = arith.constant 0 : i32
    %c0_i32_0 = arith.constant 0 : i32
    return %arg1, %c0_i32, %arg0 : i32, i32, i32
  }
}

module attributes {stable_mosaic.version = 11 : i64} {
  func.func @_bn_act_kernel(%arg0: i32, %arg1: memref<512x128xbf16, #tpu.memory_space<vmem>>, %arg2: memref<1x128xf32, #tpu.memory_space<vmem>>, %arg3: memref<1x128xf32, #tpu.memory_space<vmem>>, %arg4: memref<512x128xbf16, #tpu.memory_space<vmem>>) attributes {dimension_semantics = [#tpu.dimension_semantics<parallel>], iteration_bounds = array<i64: 1>, scalar_prefetch = 0 : i64, scratch_operands = 0 : i64, tpu.core_type = #tpu.core_type<tc>, window_params = [{transform_indices = @transform_0, window_bounds = array<i64: 512, 128>}, {pipeline_mode = #tpu.pipeline_mode<synchronous>, transform_indices = @transform_1, window_bounds = array<i64: 1, 128>}, {pipeline_mode = #tpu.pipeline_mode<synchronous>, transform_indices = @transform_2, window_bounds = array<i64: 1, 128>}, {transform_indices = @transform_3, window_bounds = array<i64: 512, 128>}]} {
    %c0 = arith.constant 0 : index
    %c0_0 = arith.constant 0 : index
    %0 = vector.load %arg1[%c0, %c0_0] : memref<512x128xbf16, #tpu.memory_space<vmem>>, vector<512x128xbf16>
    %1 = arith.extf %0 : vector<512x128xbf16> to vector<512x128xf32>
    %c0_1 = arith.constant 0 : index
    %c0_2 = arith.constant 0 : index
    %2 = vector.load %arg2[%c0_1, %c0_2] : memref<1x128xf32, #tpu.memory_space<vmem>>, vector<1x128xf32>
    %3 = vector.broadcast %2 : vector<1x128xf32> to vector<512x128xf32>
    %4 = arith.mulf %1, %3 : vector<512x128xf32>
    %c0_3 = arith.constant 0 : index
    %c0_4 = arith.constant 0 : index
    %5 = vector.load %arg3[%c0_3, %c0_4] : memref<1x128xf32, #tpu.memory_space<vmem>>, vector<1x128xf32>
    %6 = vector.broadcast %5 : vector<1x128xf32> to vector<512x128xf32>
    %7 = arith.addf %4, %6 : vector<512x128xf32>
    %cst = arith.constant 0.000000e+00 : f32
    %8 = vector.broadcast %cst : f32 to vector<512x128xf32>
    %9 = arith.maximumf %7, %8 : vector<512x128xf32>
    %10 = arith.truncf %9 : vector<512x128xf32> to vector<512x128xbf16>
    %c0_5 = arith.constant 0 : index
    %c0_6 = arith.constant 0 : index
    %11 = vector.load %arg4[%c0_5, %c0_6] : memref<512x128xbf16, #tpu.memory_space<vmem>>, vector<512x128xbf16>
    tpu.vector_store %arg4[%c0_5, %c0_6], %10 {strides = array<i32>} : memref<512x128xbf16, #tpu.memory_space<vmem>>, vector<512x128xbf16>,
    return
  }
  func.func @transform_0(%arg0: i32) -> (i32, i32) {
    %c0_i32 = arith.constant 0 : i32
    %c0_i32_0 = arith.constant 0 : i32
    return %arg0, %c0_i32 : i32, i32
  }
  func.func @transform_1(%arg0: i32) -> (i32, i32) {
    %c0_i32 = arith.constant 0 : i32
    %c0_i32_0 = arith.constant 0 : i32
    %c0_i32_1 = arith.constant 0 : i32
    return %c0_i32, %c0_i32_0 : i32, i32
  }
  func.func @transform_2(%arg0: i32) -> (i32, i32) {
    %c0_i32 = arith.constant 0 : i32
    %c0_i32_0 = arith.constant 0 : i32
    %c0_i32_1 = arith.constant 0 : i32
    return %c0_i32, %c0_i32_0 : i32, i32
  }
  func.func @transform_3(%arg0: i32) -> (i32, i32) {
    %c0_i32 = arith.constant 0 : i32
    %c0_i32_0 = arith.constant 0 : i32
    return %arg0, %c0_i32 : i32, i32
  }
}

module attributes {stable_mosaic.version = 11 : i64} {
  func.func @_bn_add_relu_kernel(%arg0: i32, %arg1: memref<512x128xbf16, #tpu.memory_space<vmem>>, %arg2: memref<1x128xf32, #tpu.memory_space<vmem>>, %arg3: memref<1x128xf32, #tpu.memory_space<vmem>>, %arg4: memref<512x128xbf16, #tpu.memory_space<vmem>>, %arg5: memref<1x128xf32, #tpu.memory_space<vmem>>, %arg6: memref<1x128xf32, #tpu.memory_space<vmem>>, %arg7: memref<512x128xf32, #tpu.memory_space<vmem>>) attributes {dimension_semantics = [#tpu.dimension_semantics<parallel>], iteration_bounds = array<i64: 1>, scalar_prefetch = 0 : i64, scratch_operands = 0 : i64, tpu.core_type = #tpu.core_type<tc>, window_params = [{transform_indices = @transform_0, window_bounds = array<i64: 512, 128>}, {pipeline_mode = #tpu.pipeline_mode<synchronous>, transform_indices = @transform_1, window_bounds = array<i64: 1, 128>}, {pipeline_mode = #tpu.pipeline_mode<synchronous>, transform_indices = @transform_2, window_bounds = array<i64: 1, 128>}, {transform_indices = @transform_3, window_bounds = array<i64: 512, 128>}, {pipeline_mode = #tpu.pipeline_mode<synchronous>, transform_indices = @transform_4, window_bounds = array<i64: 1, 128>}, {pipeline_mode = #tpu.pipeline_mode<synchronous>, transform_indices = @transform_5, window_bounds = array<i64: 1, 128>}, {transform_indices = @transform_6, window_bounds = array<i64: 512, 128>}]} {
    %c0 = arith.constant 0 : index
    %c0_0 = arith.constant 0 : index
    %0 = vector.load %arg1[%c0, %c0_0] : memref<512x128xbf16, #tpu.memory_space<vmem>>, vector<512x128xbf16>
    %1 = arith.extf %0 : vector<512x128xbf16> to vector<512x128xf32>
    %c0_1 = arith.constant 0 : index
    %c0_2 = arith.constant 0 : index
    %2 = vector.load %arg2[%c0_1, %c0_2] : memref<1x128xf32, #tpu.memory_space<vmem>>, vector<1x128xf32>
    %3 = vector.broadcast %2 : vector<1x128xf32> to vector<512x128xf32>
    %4 = arith.mulf %1, %3 : vector<512x128xf32>
    %c0_3 = arith.constant 0 : index
    %c0_4 = arith.constant 0 : index
    %5 = vector.load %arg3[%c0_3, %c0_4] : memref<1x128xf32, #tpu.memory_space<vmem>>, vector<1x128xf32>
    %6 = vector.broadcast %5 : vector<1x128xf32> to vector<512x128xf32>
    %7 = arith.addf %4, %6 : vector<512x128xf32>
    %c0_5 = arith.constant 0 : index
    %c0_6 = arith.constant 0 : index
    %8 = vector.load %arg4[%c0_5, %c0_6] : memref<512x128xbf16, #tpu.memory_space<vmem>>, vector<512x128xbf16>
    %9 = arith.extf %8 : vector<512x128xbf16> to vector<512x128xf32>
    %c0_7 = arith.constant 0 : index
    %c0_8 = arith.constant 0 : index
    %10 = vector.load %arg5[%c0_7, %c0_8] : memref<1x128xf32, #tpu.memory_space<vmem>>, vector<1x128xf32>
    %11 = vector.broadcast %10 : vector<1x128xf32> to vector<512x128xf32>
    %12 = arith.mulf %9, %11 : vector<512x128xf32>
    %c0_9 = arith.constant 0 : index
    %c0_10 = arith.constant 0 : index
    %13 = vector.load %arg6[%c0_9, %c0_10] : memref<1x128xf32, #tpu.memory_space<vmem>>, vector<1x128xf32>
    %14 = vector.broadcast %13 : vector<1x128xf32> to vector<512x128xf32>
    %15 = arith.addf %12, %14 : vector<512x128xf32>
    %16 = arith.addf %7, %15 : vector<512x128xf32>
    %cst = arith.constant 0.000000e+00 : f32
    %17 = vector.broadcast %cst : f32 to vector<512x128xf32>
    %18 = arith.maximumf %16, %17 : vector<512x128xf32>
    %c0_11 = arith.constant 0 : index
    %c0_12 = arith.constant 0 : index
    %19 = vector.load %arg7[%c0_11, %c0_12] : memref<512x128xf32, #tpu.memory_space<vmem>>, vector<512x128xf32>
    tpu.vector_store %arg7[%c0_11, %c0_12], %18 {strides = array<i32>} : memref<512x128xf32, #tpu.memory_space<vmem>>, vector<512x128xf32>,
    return
  }
  func.func @transform_0(%arg0: i32) -> (i32, i32) {
    %c0_i32 = arith.constant 0 : i32
    %c0_i32_0 = arith.constant 0 : i32
    return %arg0, %c0_i32 : i32, i32
  }
  func.func @transform_1(%arg0: i32) -> (i32, i32) {
    %c0_i32 = arith.constant 0 : i32
    %c0_i32_0 = arith.constant 0 : i32
    %c0_i32_1 = arith.constant 0 : i32
    return %c0_i32, %c0_i32_0 : i32, i32
  }
  func.func @transform_2(%arg0: i32) -> (i32, i32) {
    %c0_i32 = arith.constant 0 : i32
    %c0_i32_0 = arith.constant 0 : i32
    %c0_i32_1 = arith.constant 0 : i32
    return %c0_i32, %c0_i32_0 : i32, i32
  }
  func.func @transform_3(%arg0: i32) -> (i32, i32) {
    %c0_i32 = arith.constant 0 : i32
    %c0_i32_0 = arith.constant 0 : i32
    return %arg0, %c0_i32 : i32, i32
  }
  func.func @transform_4(%arg0: i32) -> (i32, i32) {
    %c0_i32 = arith.constant 0 : i32
    %c0_i32_0 = arith.constant 0 : i32
    %c0_i32_1 = arith.constant 0 : i32
    return %c0_i32, %c0_i32_0 : i32, i32
  }
  func.func @transform_5(%arg0: i32) -> (i32, i32) {
    %c0_i32 = arith.constant 0 : i32
    %c0_i32_0 = arith.constant 0 : i32
    %c0_i32_1 = arith.constant 0 : i32
    return %c0_i32, %c0_i32_0 : i32, i32
  }
  func.func @transform_6(%arg0: i32) -> (i32, i32) {
    %c0_i32 = arith.constant 0 : i32
    %c0_i32_0 = arith.constant 0 : i32
    return %arg0, %c0_i32 : i32, i32
  }
}

</mosaic_0001>

<llo_original>
// kernel: bottleneck_psp_forward.8
$region0: #{bottleneck_psp_forward.8}
  #allocation0 [shape = 'u32[]', space=smem, size = 0x4, offset = 0x4, fixed_abs, tag = 'smem constant byte address 0x4 - core index']
  #allocation1 [shape = 'u32[144,128]{1,0:T(1,128)}', space=vmem, size = 0x12000, scoped, tag = 'internal scratch']
  %s0 = inlined_call_operand.vmem [shape: bf16[512,128], index: 0, kind: input, shape index: {}]
  %s1 = inlined_call_operand.vmem [shape: f32[1,128], index: 1, kind: input, shape index: {}]
  %s2 = inlined_call_operand.vmem [shape: f32[1,128], index: 2, kind: input, shape index: {}]
  %s3 = inlined_call_operand.vmem [shape: bf16[512,128], index: 3, kind: output, shape index: {}]
  %s4 = sld [smem:[#allocation0]]
  $region22: #{bottleneck_psp_forward.8} parent=0
    _
  %s6 = ssub.s32 1, %s4
  %s7 = scalar_select 0, %s6, %s4
  // Predicated region
  $region2: #{bottleneck_psp_forward.8} parent=0 // pred_check
    _
  $region3: #{bottleneck_psp_forward.8} parent=0 // pred_check_branch
    %9 = sbr.rel (0) target = $region5
  $region4: #{bottleneck_psp_forward.8} parent=0 // pred_region
    _
  $region5: #{bottleneck_psp_forward.8} parent=0 // pred_fallthru
    _
  // Predicated region
  $region6: #{bottleneck_psp_forward.8} parent=0 // pred_check
    _
  $region7: #{bottleneck_psp_forward.8} parent=0 // pred_check_branch
    %11 = sbr.rel (0) target = $region9
  $region8: #{bottleneck_psp_forward.8} parent=0 // pred_region
    _
  $region9: #{bottleneck_psp_forward.8} parent=0 // pred_fallthru
    _
  // Predicated region
  $region10: #{bottleneck_psp_forward.8} parent=0 // pred_check
    _
  $region11: #{bottleneck_psp_forward.8} parent=0 // pred_check_branch
    %13 = sbr.rel (0) target = $region13
  $region12: #{bottleneck_psp_forward.8} parent=0 // pred_region
    _
  $region13: #{bottleneck_psp_forward.8} parent=0 // pred_fallthru
    _
  %v14 = vld [vmem:[%s0] sm:$0xf]
  %v15 = vld [vmem:[%s0 + $0x4] sm:$0xf]
  %v16 = vld [vmem:[%s0 + $0x8] sm:$0xf]
  %v17 = vld [vmem:[%s0 + $0xc] sm:$0xf]
  %v18 = vld [vmem:[%s0 + $0x10] sm:$0xf]
  %v19 = vld [vmem:[%s0 + $0x14] sm:$0xf]
  %v20 = vld [vmem:[%s0 + $0x18] sm:$0xf]
  %v21 = vld [vmem:[%s0 + $0x1c] sm:$0xf]
  %v22 = vld [vmem:[%s0 + $0x20] sm:$0xf]
  %v23 = vld [vmem:[%s0 + $0x24] sm:$0xf]
  %v24 = vld [vmem:[%s0 + $0x28] sm:$0xf]
  %v25 = vld [vmem:[%s0 + $0x2c] sm:$0xf]
  %v26 = vld [vmem:[%s0 + $0x30] sm:$0xf]
  %v27 = vld [vmem:[%s0 + $0x34] sm:$0xf]
  %v28 = vld [vmem:[%s0 + $0x38] sm:$0xf]
  %v29 = vld [vmem:[%s0 + $0x3c] sm:$0xf]
  %v30 = vld [vmem:[%s0 + $0x40] sm:$0xf]
  %v31 = vld [vmem:[%s0 + $0x44] sm:$0xf]
  %v32 = vld [vmem:[%s0 + $0x48] sm:$0xf]
  %v33 = vld [vmem:[%s0 + $0x4c] sm:$0xf]
  %v34 = vld [vmem:[%s0 + $0x50] sm:$0xf]
  %v35 = vld [vmem:[%s0 + $0x54] sm:$0xf]
  %v36 = vld [vmem:[%s0 + $0x58] sm:$0xf]
  %v37 = vld [vmem:[%s0 + $0x5c] sm:$0xf]
  %v38 = vld [vmem:[%s0 + $0x60] sm:$0xf]
  %v39 = vld [vmem:[%s0 + $0x64] sm:$0xf]
  %v40 = vld [vmem:[%s0 + $0x68] sm:$0xf]
  %v41 = vld [vmem:[%s0 + $0x6c] sm:$0xf]
  %v42 = vld [vmem:[%s0 + $0x70] sm:$0xf]
  %v43 = vld [vmem:[%s0 + $0x74] sm:$0xf]
  %v44 = vld [vmem:[%s0 + $0x78] sm:$0xf]
  %v45 = vld [vmem:[%s0 + $0x7c] sm:$0xf]
  %v46 = vld [vmem:[%s0 + $0x80] sm:$0xf]
  %v47 = vld [vmem:[%s0 + $0x84] sm:$0xf]
  %v48 = vld [vmem:[%s0 + $0x88] sm:$0xf]
  %v49 = vld [vmem:[%s0 + $0x8c] sm:$0xf]
  %v50 = vld [vmem:[%s0 + $0x90] sm:$0xf]
  %v51 = vld [vmem:[%s0 + $0x94] sm:$0xf]
  %v52 = vld [vmem:[%s0 + $0x98] sm:$0xf]
  %v53 = vld [vmem:[%s0 + $0x9c] sm:$0xf]
  %v54 = vld [vmem:[%s0 + $0xa0] sm:$0xf]
  %v55 = vld [vmem:[%s0 + $0xa4] sm:$0xf]
  %v56 = vld [vmem:[%s0 + $0xa8] sm:$0xf]
  %v57 = vld [vmem:[%s0 + $0xac] sm:$0xf]
  %v58 = vld [vmem:[%s0 + $0xb0] sm:$0xf]
  %v59 = vld [vmem:[%s0 + $0xb4] sm:$0xf]
  %v60 = vld [vmem:[%s0 + $0xb8] sm:$0xf]
  %v61 = vld [vmem:[%s0 + $0xbc] sm:$0xf]
  %v62 = vld [vmem:[%s0 + $0xc0] sm:$0xf]
  %v63 = vld [vmem:[%s0 + $0xc4] sm:$0xf]
  %v64 = vld [vmem:[%s0 + $0xc8] sm:$0xf]
  %v65 = vld [vmem:[%s0 + $0xcc] sm:$0xf]
  %v66 = vld [vmem:[%s0 + $0xd0] sm:$0xf]
  %v67 = vld [vmem:[%s0 + $0xd4] sm:$0xf]
  %v68 = vld [vmem:[%s0 + $0xd8] sm:$0xf]
  %v69 = vld [vmem:[%s0 + $0xdc] sm:$0xf]
  %v70 = vld [vmem:[%s0 + $0xe0] sm:$0xf]
  %v71 = vld [vmem:[%s0 + $0xe4] sm:$0xf]
  %v72 = vld [vmem:[%s0 + $0xe8] sm:$0xf]
  %v73 = vld [vmem:[%s0 + $0xec] sm:$0xf]
  %v74 = vld [vmem:[%s0 + $0xf0] sm:$0xf]
  %v75 = vld [vmem:[%s0 + $0xf4] sm:$0xf]
  %v76 = vld [vmem:[%s0 + $0xf8] sm:$0xf]
  %v77 = vld [vmem:[%s0 + $0xfc] sm:$0xf]
  %v78 = vunpack.c.l.bf16 %v14
  %v79 = vunpack.c.l.bf16 %v15
  %v80 = vunpack.c.l.bf16 %v16
  %v81 = vunpack.c.l.bf16 %v17
  %v82 = vunpack.c.l.bf16 %v18
  %v83 = vunpack.c.l.bf16 %v19
  %v84 = vunpack.c.l.bf16 %v20
  %v85 = vunpack.c.l.bf16 %v21
  %v86 = vunpack.c.l.bf16 %v22
  %v87 = vunpack.c.l.bf16 %v23
  %v88 = vunpack.c.l.bf16 %v24
  %v89 = vunpack.c.l.bf16 %v25
  %v90 = vunpack.c.l.bf16 %v26
  %v91 = vunpack.c.l.bf16 %v27
  %v92 = vunpack.c.l.bf16 %v28
  %v93 = vunpack.c.l.bf16 %v29
  %v94 = vunpack.c.l.bf16 %v30
  %v95 = vunpack.c.l.bf16 %v31
  %v96 = vunpack.c.l.bf16 %v32
  %v97 = vunpack.c.l.bf16 %v33
  %v98 = vunpack.c.l.bf16 %v34
  %v99 = vunpack.c.l.bf16 %v35
  %v100 = vunpack.c.l.bf16 %v36
  %v101 = vunpack.c.l.bf16 %v37
  %v102 = vunpack.c.l.bf16 %v38
  %v103 = vunpack.c.l.bf16 %v39
  %v104 = vunpack.c.l.bf16 %v40
  %v105 = vunpack.c.l.bf16 %v41
  %v106 = vunpack.c.l.bf16 %v42
  %v107 = vunpack.c.l.bf16 %v43
  %v108 = vunpack.c.l.bf16 %v44
  %v109 = vunpack.c.l.bf16 %v45
  %v110 = vunpack.c.l.bf16 %v46
  %v111 = vunpack.c.l.bf16 %v47
  %v112 = vunpack.c.l.bf16 %v48
  %v113 = vunpack.c.l.bf16 %v49
  %v114 = vunpack.c.l.bf16 %v50
  %v115 = vunpack.c.l.bf16 %v51
  %v116 = vunpack.c.l.bf16 %v52
  %v117 = vunpack.c.l.bf16 %v53
  %v118 = vunpack.c.l.bf16 %v54
  %v119 = vunpack.c.l.bf16 %v55
  %v120 = vunpack.c.l.bf16 %v56
  %v121 = vunpack.c.l.bf16 %v57
  %v122 = vunpack.c.l.bf16 %v58
  %v123 = vunpack.c.l.bf16 %v59
  %v124 = vunpack.c.l.bf16 %v60
  %v125 = vunpack.c.l.bf16 %v61
  %v126 = vunpack.c.l.bf16 %v62
  %v127 = vunpack.c.l.bf16 %v63
  %v128 = vunpack.c.l.bf16 %v64
  %v129 = vunpack.c.l.bf16 %v65
  %v130 = vunpack.c.l.bf16 %v66
  %v131 = vunpack.c.l.bf16 %v67
  %v132 = vunpack.c.l.bf16 %v68
  %v133 = vunpack.c.l.bf16 %v69
  %v134 = vunpack.c.l.bf16 %v70
  %v135 = vunpack.c.l.bf16 %v71
  %v136 = vunpack.c.l.bf16 %v72
  %v137 = vunpack.c.l.bf16 %v73
  %v138 = vunpack.c.l.bf16 %v74
  %v139 = vunpack.c.l.bf16 %v75
  %v140 = vunpack.c.l.bf16 %v76
  %v141 = vunpack.c.l.bf16 %v77
  %v142 = vld [vmem:[%s1] sm:$0x1]
  %v144 = vlaneseq
  %v145 = vshrl.u32 %v144, 7
  %v146 = vsub.s32 0, %v145
  %v147 = vrot.slane %v142, %v146
  %v149 = vmul.f32 %v78, %v147
  %v150 = vmul.f32 %v79, %v147
  %v151 = vmul.f32 %v80, %v147
  %v152 = vmul.f32 %v81, %v147
  %v153 = vmul.f32 %v82, %v147
  %v154 = vmul.f32 %v83, %v147
  %v155 = vmul.f32 %v84, %v147
  %v156 = vmul.f32 %v85, %v147
  %v157 = vmul.f32 %v86, %v147
  %v158 = vmul.f32 %v87, %v147
  %v159 = vmul.f32 %v88, %v147
  %v160 = vmul.f32 %v89, %v147
  %v161 = vmul.f32 %v90, %v147
  %v162 = vmul.f32 %v91, %v147
  %v163 = vmul.f32 %v92, %v147
  %v164 = vmul.f32 %v93, %v147
  %v165 = vmul.f32 %v94, %v147
  %v166 = vmul.f32 %v95, %v147
  %v167 = vmul.f32 %v96, %v147
  %v168 = vmul.f32 %v97, %v147
  %v169 = vmul.f32 %v98, %v147
  %v170 = vmul.f32 %v99, %v147
  %v171 = vmul.f32 %v100, %v147
  %v172 = vmul.f32 %v101, %v147
  %v173 = vmul.f32 %v102, %v147
  %v174 = vmul.f32 %v103, %v147
  %v175 = vmul.f32 %v104, %v147
  %v176 = vmul.f32 %v105, %v147
  %v177 = vmul.f32 %v106, %v147
  %v178 = vmul.f32 %v107, %v147
  %v179 = vmul.f32 %v108, %v147
  %v180 = vmul.f32 %v109, %v147
  %v181 = vmul.f32 %v110, %v147
  %v182 = vmul.f32 %v111, %v147
  %v183 = vmul.f32 %v112, %v147
  %v184 = vmul.f32 %v113, %v147
  %v185 = vmul.f32 %v114, %v147
  %v186 = vmul.f32 %v115, %v147
  %v187 = vmul.f32 %v116, %v147
  %v188 = vmul.f32 %v117, %v147
  %v189 = vmul.f32 %v118, %v147
  %v190 = vmul.f32 %v119, %v147
  %v191 = vmul.f32 %v120, %v147
  %v192 = vmul.f32 %v121, %v147
  %v193 = vmul.f32 %v122, %v147
  %v194 = vmul.f32 %v123, %v147
  %v195 = vmul.f32 %v124, %v147
  %v196 = vmul.f32 %v125, %v147
  %v197 = vmul.f32 %v126, %v147
  %v198 = vmul.f32 %v127, %v147
  %v199 = vmul.f32 %v128, %v147
  %v200 = vmul.f32 %v129, %v147
  %v201 = vmul.f32 %v130, %v147
  %v202 = vmul.f32 %v131, %v147
  %v203 = vmul.f32 %v132, %v147
  %v204 = vmul.f32 %v133, %v147
  %v205 = vmul.f32 %v134, %v147
  %v206 = vmul.f32 %v135, %v147
  %v207 = vmul.f32 %v136, %v147
  %v208 = vmul.f32 %v137, %v147
  %v209 = vmul.f32 %v138, %v147
  %v210 = vmul.f32 %v139, %v147
  %v211 = vmul.f32 %v140, %v147
  %v212 = vmul.f32 %v141, %v147
  %v213 = vld [vmem:[%s2] sm:$0x1]
  %v215 = vlaneseq
  %v216 = vshrl.u32 %v215, 7
  %v217 = vsub.s32 0, %v216
  %v218 = vrot.slane %v213, %v217
  %v220 = vadd.f32 %v149, %v218
  %v221 = vadd.f32 %v150, %v218
  %v222 = vadd.f32 %v151, %v218
  %v223 = vadd.f32 %v152, %v218
  %v224 = vadd.f32 %v153, %v218
  %v225 = vadd.f32 %v154, %v218
  %v226 = vadd.f32 %v155, %v218
  %v227 = vadd.f32 %v156, %v218
  %v228 = vadd.f32 %v157, %v218
  %v229 = vadd.f32 %v158, %v218
  %v230 = vadd.f32 %v159, %v218
  %v231 = vadd.f32 %v160, %v218
  %v232 = vadd.f32 %v161, %v218
  %v233 = vadd.f32 %v162, %v218
  %v234 = vadd.f32 %v163, %v218
  %v235 = vadd.f32 %v164, %v218
  %v236 = vadd.f32 %v165, %v218
  %v237 = vadd.f32 %v166, %v218
  %v238 = vadd.f32 %v167, %v218
  %v239 = vadd.f32 %v168, %v218
  %v240 = vadd.f32 %v169, %v218
  %v241 = vadd.f32 %v170, %v218
  %v242 = vadd.f32 %v171, %v218
  %v243 = vadd.f32 %v172, %v218
  %v244 = vadd.f32 %v173, %v218
  %v245 = vadd.f32 %v174, %v218
  %v246 = vadd.f32 %v175, %v218
  %v247 = vadd.f32 %v176, %v218
  %v248 = vadd.f32 %v177, %v218
  %v249 = vadd.f32 %v178, %v218
  %v250 = vadd.f32 %v179, %v218
  %v251 = vadd.f32 %v180, %v218
  %v252 = vadd.f32 %v181, %v218
  %v253 = vadd.f32 %v182, %v218
  %v254 = vadd.f32 %v183, %v218
  %v255 = vadd.f32 %v184, %v218
  %v256 = vadd.f32 %v185, %v218
  %v257 = vadd.f32 %v186, %v218
  %v258 = vadd.f32 %v187, %v218
  %v259 = vadd.f32 %v188, %v218
  %v260 = vadd.f32 %v189, %v218
  %v261 = vadd.f32 %v190, %v218
  %v262 = vadd.f32 %v191, %v218
  %v263 = vadd.f32 %v192, %v218
  %v264 = vadd.f32 %v193, %v218
  %v265 = vadd.f32 %v194, %v218
  %v266 = vadd.f32 %v195, %v218
  %v267 = vadd.f32 %v196, %v218
  %v268 = vadd.f32 %v197, %v218
  %v269 = vadd.f32 %v198, %v218
  %v270 = vadd.f32 %v199, %v218
  %v271 = vadd.f32 %v200, %v218
  %v272 = vadd.f32 %v201, %v218
  %v273 = vadd.f32 %v202, %v218
  %v274 = vadd.f32 %v203, %v218
  %v275 = vadd.f32 %v204, %v218
  %v276 = vadd.f32 %v205, %v218
  %v277 = vadd.f32 %v206, %v218
  %v278 = vadd.f32 %v207, %v218
  %v279 = vadd.f32 %v208, %v218
  %v280 = vadd.f32 %v209, %v218
  %v281 = vadd.f32 %v210, %v218
  %v282 = vadd.f32 %v211, %v218
  %v283 = vadd.f32 %v212, %v218
  %v284 = vmax.f32 %v220, 0.0
  %v285 = vmax.f32 %v221, 0.0
  %v286 = vmax.f32 %v222, 0.0
  %v287 = vmax.f32 %v223, 0.0
  %v288 = vmax.f32 %v224, 0.0
  %v289 = vmax.f32 %v225, 0.0
  %v290 = vmax.f32 %v226, 0.0
  %v291 = vmax.f32 %v227, 0.0
  %v292 = vmax.f32 %v228, 0.0
  %v293 = vmax.f32 %v229, 0.0
  %v294 = vmax.f32 %v230, 0.0
  %v295 = vmax.f32 %v231, 0.0
  %v296 = vmax.f32 %v232, 0.0
  %v297 = vmax.f32 %v233, 0.0
  %v298 = vmax.f32 %v234, 0.0
  %v299 = vmax.f32 %v235, 0.0
  %v300 = vmax.f32 %v236, 0.0
  %v301 = vmax.f32 %v237, 0.0
  %v302 = vmax.f32 %v238, 0.0
  %v303 = vmax.f32 %v239, 0.0
  %v304 = vmax.f32 %v240, 0.0
  %v305 = vmax.f32 %v241, 0.0
  %v306 = vmax.f32 %v242, 0.0
  %v307 = vmax.f32 %v243, 0.0
  %v308 = vmax.f32 %v244, 0.0
  %v309 = vmax.f32 %v245, 0.0
  %v310 = vmax.f32 %v246, 0.0
  %v311 = vmax.f32 %v247, 0.0
  %v312 = vmax.f32 %v248, 0.0
  %v313 = vmax.f32 %v249, 0.0
  %v314 = vmax.f32 %v250, 0.0
  %v315 = vmax.f32 %v251, 0.0
  %v316 = vmax.f32 %v252, 0.0
  %v317 = vmax.f32 %v253, 0.0
  %v318 = vmax.f32 %v254, 0.0
  %v319 = vmax.f32 %v255, 0.0
  %v320 = vmax.f32 %v256, 0.0
  %v321 = vmax.f32 %v257, 0.0
  %v322 = vmax.f32 %v258, 0.0
  %v323 = vmax.f32 %v259, 0.0
  %v324 = vmax.f32 %v260, 0.0
  %v325 = vmax.f32 %v261, 0.0
  %v326 = vmax.f32 %v262, 0.0
  %v327 = vmax.f32 %v263, 0.0
  %v328 = vmax.f32 %v264, 0.0
  %v329 = vmax.f32 %v265, 0.0
  %v330 = vmax.f32 %v266, 0.0
  %v331 = vmax.f32 %v267, 0.0
  %v332 = vmax.f32 %v268, 0.0
  %v333 = vmax.f32 %v269, 0.0
  %v334 = vmax.f32 %v270, 0.0
  %v335 = vmax.f32 %v271, 0.0
  %v336 = vmax.f32 %v272, 0.0
  %v337 = vmax.f32 %v273, 0.0
  %v338 = vmax.f32 %v274, 0.0
  %v339 = vmax.f32 %v275, 0.0
  %v340 = vmax.f32 %v276, 0.0
  %v341 = vmax.f32 %v277, 0.0
  %v342 = vmax.f32 %v278, 0.0
  %v343 = vmax.f32 %v279, 0.0
  %v344 = vmax.f32 %v280, 0.0
  %v345 = vmax.f32 %v281, 0.0
  %v346 = vmax.f32 %v282, 0.0
  %v347 = vmax.f32 %v283, 0.0
  %v348 = vpack.c.bf16 %v285, %v284
  %v349 = vpack.c.bf16 %v287, %v286
  %v350 = vpack.c.bf16 %v289, %v288
  %v351 = vpack.c.bf16 %v291, %v290
  %v352 = vpack.c.bf16 %v293, %v292
  %v353 = vpack.c.bf16 %v295, %v294
  %v354 = vpack.c.bf16 %v297, %v296
  %v355 = vpack.c.bf16 %v299, %v298
  %v356 = vpack.c.bf16 %v301, %v300
  %v357 = vpack.c.bf16 %v303, %v302
  %v358 = vpack.c.bf16 %v305, %v304
  %v359 = vpack.c.bf16 %v307, %v306
  %v360 = vpack.c.bf16 %v309, %v308
  %v361 = vpack.c.bf16 %v311, %v310
  %v362 = vpack.c.bf16 %v313, %v312
  %v363 = vpack.c.bf16 %v315, %v314
  %v364 = vpack.c.bf16 %v317, %v316
  %v365 = vpack.c.bf16 %v319, %v318
  %v366 = vpack.c.bf16 %v321, %v320
  %v367 = vpack.c.bf16 %v323, %v322
  %v368 = vpack.c.bf16 %v325, %v324
  %v369 = vpack.c.bf16 %v327, %v326
  %v370 = vpack.c.bf16 %v329, %v328
  %v371 = vpack.c.bf16 %v331, %v330
  %v372 = vpack.c.bf16 %v333, %v332
  %v373 = vpack.c.bf16 %v335, %v334
  %v374 = vpack.c.bf16 %v337, %v336
  %v375 = vpack.c.bf16 %v339, %v338
  %v376 = vpack.c.bf16 %v341, %v340
  %v377 = vpack.c.bf16 %v343, %v342
  %v378 = vpack.c.bf16 %v345, %v344
  %v379 = vpack.c.bf16 %v347, %v346
  %v412 = vunpack.c.l.b16 %v348
  %v413 = vunpack.c.h.b16 %v348
  %v414 = vunpack.c.l.b16 %v349
  %v415 = vunpack.c.h.b16 %v349
  %v416 = vunpack.c.l.b16 %v350
  %v417 = vunpack.c.h.b16 %v350
  %v418 = vunpack.c.l.b16 %v351
  %v419 = vunpack.c.h.b16 %v351
  %v420 = vunpack.c.l.b16 %v352
  %v421 = vunpack.c.h.b16 %v352
  %v422 = vunpack.c.l.b16 %v353
  %v423 = vunpack.c.h.b16 %v353
  %v424 = vunpack.c.l.b16 %v354
  %v425 = vunpack.c.h.b16 %v354
  %v426 = vunpack.c.l.b16 %v355
  %v427 = vunpack.c.h.b16 %v355
  %v428 = vunpack.c.l.b16 %v356
  %v429 = vunpack.c.h.b16 %v356
  %v430 = vunpack.c.l.b16 %v357
  %v431 = vunpack.c.h.b16 %v357
  %v432 = vunpack.c.l.b16 %v358
  %v433 = vunpack.c.h.b16 %v358
  %v434 = vunpack.c.l.b16 %v359
  %v435 = vunpack.c.h.b16 %v359
  %v436 = vunpack.c.l.b16 %v360
  %v437 = vunpack.c.h.b16 %v360
  %v438 = vunpack.c.l.b16 %v361
  %v439 = vunpack.c.h.b16 %v361
  %v440 = vunpack.c.l.b16 %v362
  %v441 = vunpack.c.h.b16 %v362
  %v442 = vunpack.c.l.b16 %v363
  %v443 = vunpack.c.h.b16 %v363
  %v444 = vunpack.c.l.b16 %v364
  %v445 = vunpack.c.h.b16 %v364
  %v446 = vunpack.c.l.b16 %v365
  %v447 = vunpack.c.h.b16 %v365
  %v448 = vunpack.c.l.b16 %v366
  %v449 = vunpack.c.h.b16 %v366
  %v450 = vunpack.c.l.b16 %v367
  %v451 = vunpack.c.h.b16 %v367
  %v452 = vunpack.c.l.b16 %v368
  %v453 = vunpack.c.h.b16 %v368
  %v454 = vunpack.c.l.b16 %v369
  %v455 = vunpack.c.h.b16 %v369
  %v456 = vunpack.c.l.b16 %v370
  %v457 = vunpack.c.h.b16 %v370
  %v458 = vunpack.c.l.b16 %v371
  %v459 = vunpack.c.h.b16 %v371
  %v460 = vunpack.c.l.b16 %v372
  %v461 = vunpack.c.h.b16 %v372
  %v462 = vunpack.c.l.b16 %v373
  %v463 = vunpack.c.h.b16 %v373
  %v464 = vunpack.c.l.b16 %v374
  %v465 = vunpack.c.h.b16 %v374
  %v466 = vunpack.c.l.b16 %v375
  %v467 = vunpack.c.h.b16 %v375
  %v468 = vunpack.c.l.b16 %v376
  %v469 = vunpack.c.h.b16 %v376
  %v470 = vunpack.c.l.b16 %v377
  %v471 = vunpack.c.h.b16 %v377
  %v472 = vunpack.c.l.b16 %v378
  %v473 = vunpack.c.h.b16 %v378
  %v474 = vunpack.c.l.b16 %v379
  %v475 = vunpack.c.h.b16 %v379
  %v476 = vpack.c.b16 %v412, %v412
  %v477 = vpack.c.b16 %v413, %v413
  %v478 = vpack.c.b16 %v414, %v414
  %v479 = vpack.c.b16 %v415, %v415
  %v480 = vpack.c.b16 %v416, %v416
  %v481 = vpack.c.b16 %v417, %v417
  %v482 = vpack.c.b16 %v418, %v418
  %v483 = vpack.c.b16 %v419, %v419
  %v484 = vpack.c.b16 %v420, %v420
  %v485 = vpack.c.b16 %v421, %v421
  %v486 = vpack.c.b16 %v422, %v422
  %v487 = vpack.c.b16 %v423, %v423
  %v488 = vpack.c.b16 %v424, %v424
  %v489 = vpack.c.b16 %v425, %v425
  %v490 = vpack.c.b16 %v426, %v426
  %v491 = vpack.c.b16 %v427, %v427
  %v492 = vpack.c.b16 %v428, %v428
  %v493 = vpack.c.b16 %v429, %v429
  %v494 = vpack.c.b16 %v430, %v430
  %v495 = vpack.c.b16 %v431, %v431
  %v496 = vpack.c.b16 %v432, %v432
  %v497 = vpack.c.b16 %v433, %v433
  %v498 = vpack.c.b16 %v434, %v434
  %v499 = vpack.c.b16 %v435, %v435
  %v500 = vpack.c.b16 %v436, %v436
  %v501 = vpack.c.b16 %v437, %v437
  %v502 = vpack.c.b16 %v438, %v438
  %v503 = vpack.c.b16 %v439, %v439
  %v504 = vpack.c.b16 %v440, %v440
  %v505 = vpack.c.b16 %v441, %v441
  %v506 = vpack.c.b16 %v442, %v442
  %v507 = vpack.c.b16 %v443, %v443
  %v508 = vpack.c.b16 %v444, %v444
  %v509 = vpack.c.b16 %v445, %v445
  %v510 = vpack.c.b16 %v446, %v446
  %v511 = vpack.c.b16 %v447, %v447
  %v512 = vpack.c.b16 %v448, %v448
  %v513 = vpack.c.b16 %v449, %v449
  %v514 = vpack.c.b16 %v450, %v450
  %v515 = vpack.c.b16 %v451, %v451
  %v516 = vpack.c.b16 %v452, %v452
  %v517 = vpack.c.b16 %v453, %v453
  %v518 = vpack.c.b16 %v454, %v454
  %v519 = vpack.c.b16 %v455, %v455
  %v520 = vpack.c.b16 %v456, %v456
  %v521 = vpack.c.b16 %v457, %v457
  %v522 = vpack.c.b16 %v458, %v458
  %v523 = vpack.c.b16 %v459, %v459
  %v524 = vpack.c.b16 %v460, %v460
  %v525 = vpack.c.b16 %v461, %v461
  %v526 = vpack.c.b16 %v462, %v462
  %v527 = vpack.c.b16 %v463, %v463
  %v528 = vpack.c.b16 %v464, %v464
  %v529 = vpack.c.b16 %v465, %v465
  %v530 = vpack.c.b16 %v466, %v466
  %v531 = vpack.c.b16 %v467, %v467
  %v532 = vpack.c.b16 %v468, %v468
  %v533 = vpack.c.b16 %v469, %v469
  %v534 = vpack.c.b16 %v470, %v470
  %v535 = vpack.c.b16 %v471, %v471
  %v536 = vpack.c.b16 %v472, %v472
  %v537 = vpack.c.b16 %v473, %v473
  %v538 = vpack.c.b16 %v474, %v474
  %v539 = vpack.c.b16 %v475, %v475
  %604 = vst [vmem:[%s3] sm:$0xf] %v476
  %605 = vst [vmem:[%s3 + $0x4] sm:$0xf] %v477
  %606 = vst [vmem:[%s3 + $0x8] sm:$0xf] %v478
  %607 = vst [vmem:[%s3 + $0xc] sm:$0xf] %v479
  %608 = vst [vmem:[%s3 + $0x10] sm:$0xf] %v480
  %609 = vst [vmem:[%s3 + $0x14] sm:$0xf] %v481
  %610 = vst [vmem:[%s3 + $0x18] sm:$0xf] %v482
  %611 = vst [vmem:[%s3 + $0x1c] sm:$0xf] %v483
  %612 = vst [vmem:[%s3 + $0x20] sm:$0xf] %v484
  %613 = vst [vmem:[%s3 + $0x24] sm:$0xf] %v485
  %614 = vst [vmem:[%s3 + $0x28] sm:$0xf] %v486
  %615 = vst [vmem:[%s3 + $0x2c] sm:$0xf] %v487
  %616 = vst [vmem:[%s3 + $0x30] sm:$0xf] %v488
  %617 = vst [vmem:[%s3 + $0x34] sm:$0xf] %v489
  %618 = vst [vmem:[%s3 + $0x38] sm:$0xf] %v490
  %619 = vst [vmem:[%s3 + $0x3c] sm:$0xf] %v491
  %620 = vst [vmem:[%s3 + $0x40] sm:$0xf] %v492
  %621 = vst [vmem:[%s3 + $0x44] sm:$0xf] %v493
  %622 = vst [vmem:[%s3 + $0x48] sm:$0xf] %v494
  %623 = vst [vmem:[%s3 + $0x4c] sm:$0xf] %v495
  %624 = vst [vmem:[%s3 + $0x50] sm:$0xf] %v496
  %625 = vst [vmem:[%s3 + $0x54] sm:$0xf] %v497
  %626 = vst [vmem:[%s3 + $0x58] sm:$0xf] %v498
  %627 = vst [vmem:[%s3 + $0x5c] sm:$0xf] %v499
  %628 = vst [vmem:[%s3 + $0x60] sm:$0xf] %v500
  %629 = vst [vmem:[%s3 + $0x64] sm:$0xf] %v501
  %630 = vst [vmem:[%s3 + $0x68] sm:$0xf] %v502
  %631 = vst [vmem:[%s3 + $0x6c] sm:$0xf] %v503
  %632 = vst [vmem:[%s3 + $0x70] sm:$0xf] %v504
  %633 = vst [vmem:[%s3 + $0x74] sm:$0xf] %v505
  %634 = vst [vmem:[%s3 + $0x78] sm:$0xf] %v506
  %635 = vst [vmem:[%s3 + $0x7c] sm:$0xf] %v507
  %636 = vst [vmem:[%s3 + $0x80] sm:$0xf] %v508
  %637 = vst [vmem:[%s3 + $0x84] sm:$0xf] %v509
  %638 = vst [vmem:[%s3 + $0x88] sm:$0xf] %v510
  %639 = vst [vmem:[%s3 + $0x8c] sm:$0xf] %v511
  %640 = vst [vmem:[%s3 + $0x90] sm:$0xf] %v512
  %641 = vst [vmem:[%s3 + $0x94] sm:$0xf] %v513
  %642 = vst [vmem:[%s3 + $0x98] sm:$0xf] %v514
  %643 = vst [vmem:[%s3 + $0x9c] sm:$0xf] %v515
  %644 = vst [vmem:[%s3 + $0xa0] sm:$0xf] %v516
  %645 = vst [vmem:[%s3 + $0xa4] sm:$0xf] %v517
  %646 = vst [vmem:[%s3 + $0xa8] sm:$0xf] %v518
  %647 = vst [vmem:[%s3 + $0xac] sm:$0xf] %v519
  %648 = vst [vmem:[%s3 + $0xb0] sm:$0xf] %v520
  %649 = vst [vmem:[%s3 + $0xb4] sm:$0xf] %v521
  %650 = vst [vmem:[%s3 + $0xb8] sm:$0xf] %v522
  %651 = vst [vmem:[%s3 + $0xbc] sm:$0xf] %v523
  %652 = vst [vmem:[%s3 + $0xc0] sm:$0xf] %v524
  %653 = vst [vmem:[%s3 + $0xc4] sm:$0xf] %v525
  %654 = vst [vmem:[%s3 + $0xc8] sm:$0xf] %v526
  %655 = vst [vmem:[%s3 + $0xcc] sm:$0xf] %v527
  %656 = vst [vmem:[%s3 + $0xd0] sm:$0xf] %v528
  %657 = vst [vmem:[%s3 + $0xd4] sm:$0xf] %v529
  %658 = vst [vmem:[%s3 + $0xd8] sm:$0xf] %v530
  %659 = vst [vmem:[%s3 + $0xdc] sm:$0xf] %v531
  %660 = vst [vmem:[%s3 + $0xe0] sm:$0xf] %v532
  %661 = vst [vmem:[%s3 + $0xe4] sm:$0xf] %v533
  %662 = vst [vmem:[%s3 + $0xe8] sm:$0xf] %v534
  %663 = vst [vmem:[%s3 + $0xec] sm:$0xf] %v535
  %664 = vst [vmem:[%s3 + $0xf0] sm:$0xf] %v536
  %665 = vst [vmem:[%s3 + $0xf4] sm:$0xf] %v537
  %666 = vst [vmem:[%s3 + $0xf8] sm:$0xf] %v538
  %667 = vst [vmem:[%s3 + $0xfc] sm:$0xf] %v539
  // Predicated region
  $region14: #{bottleneck_psp_forward.8} parent=0 // pred_check
    _
  $region15: #{bottleneck_psp_forward.8} parent=0 // pred_check_branch
    %669 = sbr.rel (0) target = $region17
  $region16: #{bottleneck_psp_forward.8} parent=0 // pred_region
    _
  $region17: #{bottleneck_psp_forward.8} parent=0 // pred_fallthru
    _
  // Predicated region
  $region18: #{bottleneck_psp_forward.8} parent=0 // pred_check
    _
  $region19: #{bottleneck_psp_forward.8} parent=0 // pred_check_branch
    %671 = sbr.rel (0) target = $region21
  $region20: #{bottleneck_psp_forward.8} parent=0 // pred_region
    _
  $region21: #{bottleneck_psp_forward.8} parent=0 // pred_fallthru
    _

// kernel: bottleneck_psp_forward.7
$region0: #{bottleneck_psp_forward.7}
  #allocation0 [shape = 'u32[]', space=smem, size = 0x4, offset = 0x4, fixed_abs, tag = 'smem constant byte address 0x4 - core index']
  #allocation1 [shape = 'u32[144,128]{1,0:T(1,128)}', space=vmem, size = 0x12000, scoped, tag = 'internal scratch']
  #allocation2 [shape = 'f32[256,128]{1,0:T(8,128)}', space=vmem, size = 0x20000, scoped, tag = 'scratch operand']
  %s0 = inlined_call_operand.vmem [shape: bf16[512,128], index: 0, kind: input, shape index: {}]
  %s1 = inlined_call_operand.vmem [shape: bf16[128,128], index: 1, kind: input, shape index: {}]
  %s2 = inlined_call_operand.vmem [shape: bf16[512,128], index: 2, kind: output, shape index: {0}]
  %s3 = inlined_call_operand.vmem [shape: f32[2,2,128], index: 3, kind: output, shape index: {1}]
  %4 = xla_tuple %s2, %s3
  %s5 = sld [smem:[#allocation0]]
  $region57: #{bottleneck_psp_forward.7} parent=0
    _
  %s7 = ssub.s32 1, %s5
  %s8 = scalar_select 0, %s7, %s5
  loop: start=0, step=1, limit=4
  $region2: #{bottleneck_psp_forward.7} parent=0 // loop_pre_header
    _
  $region3: #{bottleneck_psp_forward.7} parent=0 // loop_header
    %s10 = sphi 0, %s14
    %p11 = scmp.ge.s32.totalorder %s10, 4
    %s17 = sphi 0, %s36
    %s18 = sphi 0, %s32
    %s19 = sphi 0, %s28
    %s20 = sphi 0, %s17
    %s21 = sphi 0, %s18
    %s22 = sphi 0, %s19
    %s23 = sphi 0, %s20
    %s24 = sphi 0, %s21
    %s25 = sphi 0, %s22
    %s41 = sphi 0, %s43
    %s44 = sphi 0, %s41
    %s45 = sphi 0, %s44
    %s61 = sphi 0, %s45
    %s67 = sphi 0, %s69
    %s70 = sphi 0, %s67
    %s71 = sphi 0, %s70
    %s87 = sphi 0, %s71
    %s95 = sphi 0, %s97
    %s98 = sphi 0, %s95
    %s99 = sphi 0, %s98
    %s115 = sphi 0, %s99
    %s123 = sphi 0, %s125
    %s126 = sphi 0, %s123
    %s127 = sphi 0, %s126
    %s143 = sphi 0, %s127
  $region4: #{bottleneck_psp_forward.7} parent=0 // loop_header_branch
    %13 = sbr.rel (%p11) target = $region8
  $region5: #{bottleneck_psp_forward.7} parent=0 // loop_body
    %s15 = ssub.s32 %s10, 1
    %s16 = ssub.s32 %s10, 2
    %s26 = sadd.s32 1, %s19
    %p27 = scmp.ge.s32.totalorder %s26, 1
    %s28 = scalar_select %p27, 0, %s26
    %s29 = sadd.s32 1, %s18
    %s30 = scalar_select %p27, %s29, %s18
    %p31 = scmp.ge.s32.totalorder %s30, 2
    %s32 = scalar_select %p31, 0, %s30
    %s33 = sadd.s32 1, %s17
    %s34 = scalar_select %p31, %s33, %s17
    %p35 = scmp.ge.s32.totalorder %s34, 1
    %s36 = scalar_select %p35, 0, %s34
    %s37 = ssub.s32 %s18, %s32
    %s38 = ssub.s32 %s19, %s28
    %s39 = sor.u32 %s37, %s38
    %p40 = scmp.eq.s32.totalorder %s39, 0
    %s42 = sadd.s32 %s41, 1
    %s43 = scalar_select %p40, %s41, %s42
    %p46 = pneg %p40
    %p47 = scmp.eq.s32.totalorder %s10, 1
    %p48 = por %p46, %p47
    %p49 = scmp.ne.s32.totalorder %s41, %s44
    %p50 = scmp.eq.s32.totalorder %s10, 0
    %p51 = por %p49, %p50
    %p52 = scmp.ne.s32.totalorder %s41, %s44
    %p53 = scmp.eq.s32.totalorder %s15, 1
    %p54 = por %p52, %p53
    %p55 = scmp.ne.s32.totalorder %s44, %s45
    %p56 = scmp.eq.s32.totalorder %s15, 0
    %p57 = por %p55, %p56
    %p58 = scmp.ne.s32.totalorder %s44, %s45
    %p59 = scmp.eq.s32.totalorder %s16, 1
    %p60 = por %p58, %p59
    %p62 = scmp.ne.s32.totalorder %s45, %s61
    %p63 = scmp.eq.s32.totalorder %s16, 0
    %p64 = por %p62, %p63
    %s65 = ssub.s32 %s17, %s36
    %p66 = scmp.eq.s32.totalorder %s65, 0
    %s68 = sadd.s32 %s67, 1
    %s69 = scalar_select %p66, %s67, %s68
    %p72 = pneg %p66
    %p73 = scmp.eq.s32.totalorder %s10, 1
    %p74 = por %p72, %p73
    %p75 = scmp.ne.s32.totalorder %s67, %s70
    %p76 = scmp.eq.s32.totalorder %s10, 0
    %p77 = por %p75, %p76
    %p78 = scmp.ne.s32.totalorder %s67, %s70
    %p79 = scmp.eq.s32.totalorder %s15, 1
    %p80 = por %p78, %p79
    %p81 = scmp.ne.s32.totalorder %s70, %s71
    %p82 = scmp.eq.s32.totalorder %s15, 0
    %p83 = por %p81, %p82
    %p84 = scmp.ne.s32.totalorder %s70, %s71
    %p85 = scmp.eq.s32.totalorder %s16, 1
    %p86 = por %p84, %p85
    %p88 = scmp.ne.s32.totalorder %s71, %s87
    %p89 = scmp.eq.s32.totalorder %s16, 0
    %p90 = por %p88, %p89
    %s91 = ssub.s32 %s18, %s32
    %s92 = ssub.s32 %s17, %s36
    %s93 = sor.u32 %s91, %s92
    %p94 = scmp.eq.s32.totalorder %s93, 0
    %s96 = sadd.s32 %s95, 1
    %s97 = scalar_select %p94, %s95, %s96
    %p100 = pneg %p94
    %p101 = scmp.eq.s32.totalorder %s10, 1
    %p102 = por %p100, %p101
    %p103 = scmp.ne.s32.totalorder %s95, %s98
    %p104 = scmp.eq.s32.totalorder %s10, 0
    %p105 = por %p103, %p104
    %p106 = scmp.ne.s32.totalorder %s95, %s98
    %p107 = scmp.eq.s32.totalorder %s15, 1
    %p108 = por %p106, %p107
    %p109 = scmp.ne.s32.totalorder %s98, %s99
    %p110 = scmp.eq.s32.totalorder %s15, 0
    %p111 = por %p109, %p110
    %p112 = scmp.ne.s32.totalorder %s98, %s99
    %p113 = scmp.eq.s32.totalorder %s16, 1
    %p114 = por %p112, %p113
    %p116 = scmp.ne.s32.totalorder %s99, %s115
    %p117 = scmp.eq.s32.totalorder %s16, 0
    %p118 = por %p116, %p117
    %s119 = ssub.s32 %s18, %s32
    %s120 = ssub.s32 %s17, %s36
    %s121 = sor.u32 %s119, %s120
    %p122 = scmp.eq.s32.totalorder %s121, 0
    %s124 = sadd.s32 %s123, 1
    %s125 = scalar_select %p122, %s123, %s124
    %p128 = pneg %p122
    %p129 = scmp.eq.s32.totalorder %s10, 1
    %p130 = por %p128, %p129
    %p131 = scmp.ne.s32.totalorder %s123, %s126
    %p132 = scmp.eq.s32.totalorder %s10, 0
    %p133 = por %p131, %p132
    %p134 = scmp.ne.s32.totalorder %s123, %s126
    %p135 = scmp.eq.s32.totalorder %s15, 1
    %p136 = por %p134, %p135
    %p137 = scmp.ne.s32.totalorder %s126, %s127
    %p138 = scmp.eq.s32.totalorder %s15, 0
    %p139 = por %p137, %p138
    %p140 = scmp.ne.s32.totalorder %s126, %s127
    %p141 = scmp.eq.s32.totalorder %s16, 1
    %p142 = por %p140, %p141
    %p144 = scmp.ne.s32.totalorder %s127, %s143
    %p145 = scmp.eq.s32.totalorder %s16, 0
    %p146 = por %p144, %p145
    %p147 = scmp.le.s32.totalorder 1, %s10
    %p148 = scmp.lt.s32.totalorder %s10, 3
    %p149 = pnand %p147, %p148
    %p150 = pneg %p149
    // Predicated region
    $region9: #{bottleneck_psp_forward.7} parent=5 // pred_check
      _
    $region10: #{bottleneck_psp_forward.7} parent=5 // pred_check_branch
      %152 = sbr.rel (%p149) target = $region12
    $region11: #{bottleneck_psp_forward.7} parent=5 // pred_region
      %s153 = ssub.s32 %s10, 1
      // Predicated region
      $region13: #{bottleneck_psp_forward.7} parent=11 // pred_check
        %p154 = pneg %p83
      $region14: #{bottleneck_psp_forward.7} parent=11 // pred_check_branch
        %156 = sbr.rel (%p154) target = $region16
      $region15: #{bottleneck_psp_forward.7} parent=11 // pred_region
        %p157 = scmp.lt.s32.totalorder %s20, 0
        %s158 = scalar_select %p157, %s20, 0
        %s159 = smul.addr %s158, 4
        %s160 = scalar_lea.vmem %s1, %s159
      $region16: #{bottleneck_psp_forward.7} parent=11 // pred_fallthru
        _
    $region12: #{bottleneck_psp_forward.7} parent=5 // pred_fallthru
      _
    %p161 = scmp.lt.s32.totalorder %s10, 2
    // Predicated region
    $region17: #{bottleneck_psp_forward.7} parent=5 // pred_check
      %p162 = pneg %p161
    $region18: #{bottleneck_psp_forward.7} parent=5 // pred_check_branch
      %164 = sbr.rel (%p162) target = $region20
    $region19: #{bottleneck_psp_forward.7} parent=5 // pred_region
      // Predicated region
      $region21: #{bottleneck_psp_forward.7} parent=19 // pred_check
        %p165 = pneg %p51
      $region22: #{bottleneck_psp_forward.7} parent=19 // pred_check_branch
        %167 = sbr.rel (%p165) target = $region24
      $region23: #{bottleneck_psp_forward.7} parent=19 // pred_region
        %s168 = smul.u32 32, %s18
        %p169 = scmp.lt.s32.totalorder %s168, 63
        %s170 = scalar_select %p169, %s168, 63
        %p171 = scmp.lt.s32.totalorder %s19, 0
        %s172 = scalar_select %p171, %s19, 0
        %s173 = sadd.s32 %s172, %s170
        %s174 = smul.addr %s173, 4
        %s175 = scalar_lea.vmem %s0, %s174
        %s176 = smul.u32 32, %s18
      $region24: #{bottleneck_psp_forward.7} parent=19 // pred_fallthru
        _
    $region20: #{bottleneck_psp_forward.7} parent=5 // pred_fallthru
      _
    %p177 = scmp.le.s32.totalorder 1, %s10
    %p178 = scmp.lt.s32.totalorder %s10, 3
    %p179 = pnand %p177, %p178
    %p180 = pneg %p179
    // Predicated region
    $region25: #{bottleneck_psp_forward.7} parent=5 // pred_check
      _
    $region26: #{bottleneck_psp_forward.7} parent=5 // pred_check_branch
      %182 = sbr.rel (%p179) target = $region28
    $region27: #{bottleneck_psp_forward.7} parent=5 // pred_region
      %s183 = ssub.s32 %s10, 1
      %s184 = smul.u32 32, %s21
      %p185 = scmp.lt.s32.totalorder %s184, 63
      %s186 = scalar_select %p185, %s184, 63
      %p187 = scmp.lt.s32.totalorder %s22, 0
      %s188 = scalar_select %p187, %s22, 0
      %s189 = sadd.s32 %s188, %s186
      %s190 = smul.addr %s189, 4
      %s191 = scalar_lea.vmem %s0, %s190
      %p192 = pneg %p57
      %p193 = pneg %p54
      %p194 = scmp.lt.s32.totalorder %s20, 0
      %s195 = scalar_select %p194, %s20, 0
      %s196 = smul.addr %s195, 4
      %s197 = scalar_lea.vmem %s1, %s196
      %p198 = pneg %p83
      %p199 = pneg %p80
      %p200 = pneg %p111
      %p201 = pneg %p108
      %s202 = smul.u32 32, %s21
      %p203 = scmp.lt.s32.totalorder %s202, 63
      %s204 = scalar_select %p203, %s202, 63
      %p205 = scmp.lt.s32.totalorder %s20, 0
      %s206 = scalar_select %p205, %s20, 0
      %s207 = sadd.s32 %s206, %s204
      %s208 = smul.addr %s207, 4
      %s209 = scalar_lea.vmem %s2, %s208
      %p210 = pneg %p139
      %p211 = pneg %p136
      %p212 = scmp.lt.s32.totalorder %s21, 1
      %s213 = scalar_select %p212, %s21, 1
      %p214 = scmp.lt.s32.totalorder %s20, 0
      %s215 = scalar_select %p214, %s20, 0
      %s216 = sadd.s32 %s215, %s213
      %s217 = smul.addr %s216, 2
      %s218 = scalar_lea.vmem %s3, %s217
      %s219 = smul.u32 32, %s21
      %p220 = scmp.lt.s32.totalorder %s219, 63
      %s221 = scalar_select %p220, %s219, 63
      %p222 = scmp.lt.s32.totalorder %s22, 0
      %s223 = scalar_select %p222, %s22, 0
      %s224 = sadd.s32 %s223, %s221
      %s225 = smul.addr %s224, 4
      %s226 = scalar_lea.vmem %s0, %s225
      %s227 = smul.u32 32, %s21
      %p228 = scmp.lt.s32.totalorder %s20, 0
      %s229 = scalar_select %p228, %s20, 0
      %s230 = smul.addr %s229, 4
      %s231 = scalar_lea.vmem %s1, %s230
      %s232 = smul.u32 32, %s21
      %p233 = scmp.lt.s32.totalorder %s232, 63
      %s234 = scalar_select %p233, %s232, 63
      %p235 = scmp.lt.s32.totalorder %s20, 0
      %s236 = scalar_select %p235, %s20, 0
      %s237 = sadd.s32 %s236, %s234
      %s238 = smul.addr %s237, 4
      %s239 = scalar_lea.vmem %s2, %s238
      %s240 = smul.u32 32, %s21
      %p241 = scmp.lt.s32.totalorder %s21, 1
      %s242 = scalar_select %p241, %s21, 1
      %p243 = scmp.lt.s32.totalorder %s20, 0
      %s244 = scalar_select %p243, %s20, 0
      %s245 = sadd.s32 %s244, %s242
      %s246 = smul.addr %s245, 2
      %s247 = scalar_lea.vmem %s3, %s246
      %p249 = scmp.eq.s32.totalorder %s22, 0
      // Predicated region
      $region29: #{bottleneck_psp_forward.7} parent=27 // pred_check
        %p250 = pneg %p249
      $region30: #{bottleneck_psp_forward.7} parent=27 // pred_check_branch
        %252 = sbr.rel (%p250) target = $region32
      $region31: #{bottleneck_psp_forward.7} parent=27 // pred_region
        %253 = vst [vmem:[#allocation2] sm:$0xff] 0.0
        %254 = vst [vmem:[#allocation2 + $0x8] sm:$0xff] 0.0
        %255 = vst [vmem:[#allocation2 + $0x10] sm:$0xff] 0.0
        %256 = vst [vmem:[#allocation2 + $0x18] sm:$0xff] 0.0
        %257 = vst [vmem:[#allocation2 + $0x20] sm:$0xff] 0.0
        %258 = vst [vmem:[#allocation2 + $0x28] sm:$0xff] 0.0
        %259 = vst [vmem:[#allocation2 + $0x30] sm:$0xff] 0.0
        %260 = vst [vmem:[#allocation2 + $0x38] sm:$0xff] 0.0
        %261 = vst [vmem:[#allocation2 + $0x40] sm:$0xff] 0.0
        %262 = vst [vmem:[#allocation2 + $0x48] sm:$0xff] 0.0
        %263 = vst [vmem:[#allocation2 + $0x50] sm:$0xff] 0.0
        %264 = vst [vmem:[#allocation2 + $0x58] sm:$0xff] 0.0
        %265 = vst [vmem:[#allocation2 + $0x60] sm:$0xff] 0.0
        %266 = vst [vmem:[#allocation2 + $0x68] sm:$0xff] 0.0
        %267 = vst [vmem:[#allocation2 + $0x70] sm:$0xff] 0.0
        %268 = vst [vmem:[#allocation2 + $0x78] sm:$0xff] 0.0
        %269 = vst [vmem:[#allocation2 + $0x80] sm:$0xff] 0.0
        %270 = vst [vmem:[#allocation2 + $0x88] sm:$0xff] 0.0
        %271 = vst [vmem:[#allocation2 + $0x90] sm:$0xff] 0.0
        %272 = vst [vmem:[#allocation2 + $0x98] sm:$0xff] 0.0
        %273 = vst [vmem:[#allocation2 + $0xa0] sm:$0xff] 0.0
        %274 = vst [vmem:[#allocation2 + $0xa8] sm:$0xff] 0.0
        %275 = vst [vmem:[#allocation2 + $0xb0] sm:$0xff] 0.0
        %276 = vst [vmem:[#allocation2 + $0xb8] sm:$0xff] 0.0
        %277 = vst [vmem:[#allocation2 + $0xc0] sm:$0xff] 0.0
        %278 = vst [vmem:[#allocation2 + $0xc8] sm:$0xff] 0.0
        %279 = vst [vmem:[#allocation2 + $0xd0] sm:$0xff] 0.0
        %280 = vst [vmem:[#allocation2 + $0xd8] sm:$0xff] 0.0
        %281 = vst [vmem:[#allocation2 + $0xe0] sm:$0xff] 0.0
        %282 = vst [vmem:[#allocation2 + $0xe8] sm:$0xff] 0.0
        %283 = vst [vmem:[#allocation2 + $0xf0] sm:$0xff] 0.0
        %284 = vst [vmem:[#allocation2 + $0xf8] sm:$0xff] 0.0
      $region32: #{bottleneck_psp_forward.7} parent=27 // pred_fallthru
        _
      %s285 = smul.u32 %s22, 128
      %v286 = vld [vmem:[#allocation2] sm:$0xff]
      %v287 = vld [vmem:[#allocation2 + $0x8] sm:$0xff]
      %v288 = vld [vmem:[#allocation2 + $0x10] sm:$0xff]
      %v289 = vld [vmem:[#allocation2 + $0x18] sm:$0xff]
      %v290 = vld [vmem:[#allocation2 + $0x20] sm:$0xff]
      %v291 = vld [vmem:[#allocation2 + $0x28] sm:$0xff]
      %v292 = vld [vmem:[#allocation2 + $0x30] sm:$0xff]
      %v293 = vld [vmem:[#allocation2 + $0x38] sm:$0xff]
      %v294 = vld [vmem:[#allocation2 + $0x40] sm:$0xff]
      %v295 = vld [vmem:[#allocation2 + $0x48] sm:$0xff]
      %v296 = vld [vmem:[#allocation2 + $0x50] sm:$0xff]
      %v297 = vld [vmem:[#allocation2 + $0x58] sm:$0xff]
      %v298 = vld [vmem:[#allocation2 + $0x60] sm:$0xff]
      %v299 = vld [vmem:[#allocation2 + $0x68] sm:$0xff]
      %v300 = vld [vmem:[#allocation2 + $0x70] sm:$0xff]
      %v301 = vld [vmem:[#allocation2 + $0x78] sm:$0xff]
      %v302 = vld [vmem:[#allocation2 + $0x80] sm:$0xff]
      %v303 = vld [vmem:[#allocation2 + $0x88] sm:$0xff]
      %v304 = vld [vmem:[#allocation2 + $0x90] sm:$0xff]
      %v305 = vld [vmem:[#allocation2 + $0x98] sm:$0xff]
      %v306 = vld [vmem:[#allocation2 + $0xa0] sm:$0xff]
      %v307 = vld [vmem:[#allocation2 + $0xa8] sm:$0xff]
      %v308 = vld [vmem:[#allocation2 + $0xb0] sm:$0xff]
      %v309 = vld [vmem:[#allocation2 + $0xb8] sm:$0xff]
      %v310 = vld [vmem:[#allocation2 + $0xc0] sm:$0xff]
      %v311 = vld [vmem:[#allocation2 + $0xc8] sm:$0xff]
      %v312 = vld [vmem:[#allocation2 + $0xd0] sm:$0xff]
      %v313 = vld [vmem:[#allocation2 + $0xd8] sm:$0xff]
      %v314 = vld [vmem:[#allocation2 + $0xe0] sm:$0xff]
      %v315 = vld [vmem:[#allocation2 + $0xe8] sm:$0xff]
      %v316 = vld [vmem:[#allocation2 + $0xf0] sm:$0xff]
      %v317 = vld [vmem:[#allocation2 + $0xf8] sm:$0xff]
      %v318 = vld [vmem:[%s226] sm:$0xf]
      %v319 = vld [vmem:[%s226 + $0x4] sm:$0xf]
      %v320 = vld [vmem:[%s226 + $0x8] sm:$0xf]
      %v321 = vld [vmem:[%s226 + $0xc] sm:$0xf]
      %v322 = vld [vmem:[%s226 + $0x10] sm:$0xf]
      %v323 = vld [vmem:[%s226 + $0x14] sm:$0xf]
      %v324 = vld [vmem:[%s226 + $0x18] sm:$0xf]
      %v325 = vld [vmem:[%s226 + $0x1c] sm:$0xf]
      %v326 = vld [vmem:[%s226 + $0x20] sm:$0xf]
      %v327 = vld [vmem:[%s226 + $0x24] sm:$0xf]
      %v328 = vld [vmem:[%s226 + $0x28] sm:$0xf]
      %v329 = vld [vmem:[%s226 + $0x2c] sm:$0xf]
      %v330 = vld [vmem:[%s226 + $0x30] sm:$0xf]
      %v331 = vld [vmem:[%s226 + $0x34] sm:$0xf]
      %v332 = vld [vmem:[%s226 + $0x38] sm:$0xf]
      %v333 = vld [vmem:[%s226 + $0x3c] sm:$0xf]
      %v334 = vld [vmem:[%s226 + $0x40] sm:$0xf]
      %v335 = vld [vmem:[%s226 + $0x44] sm:$0xf]
      %v336 = vld [vmem:[%s226 + $0x48] sm:$0xf]
      %v337 = vld [vmem:[%s226 + $0x4c] sm:$0xf]
      %v338 = vld [vmem:[%s226 + $0x50] sm:$0xf]
      %v339 = vld [vmem:[%s226 + $0x54] sm:$0xf]
      %v340 = vld [vmem:[%s226 + $0x58] sm:$0xf]
      %v341 = vld [vmem:[%s226 + $0x5c] sm:$0xf]
      %v342 = vld [vmem:[%s226 + $0x60] sm:$0xf]
      %v343 = vld [vmem:[%s226 + $0x64] sm:$0xf]
      %v344 = vld [vmem:[%s226 + $0x68] sm:$0xf]
      %v345 = vld [vmem:[%s226 + $0x6c] sm:$0xf]
      %v346 = vld [vmem:[%s226 + $0x70] sm:$0xf]
      %v347 = vld [vmem:[%s226 + $0x74] sm:$0xf]
      %v348 = vld [vmem:[%s226 + $0x78] sm:$0xf]
      %v349 = vld [vmem:[%s226 + $0x7c] sm:$0xf]
      %s350 = sshra.s32 %s285, 3
      %s351 = sand.u32 %s285, 7
      %s352 = smul.addr %s350, 4
      %s353 = scalar_lea.vmem %s231, %s352
      %v354 = vld [vmem:[%s353] sm:$0xf]
      %v355 = vld [vmem:[%s353 + $0x4] sm:$0xf]
      %v356 = vld [vmem:[%s353 + $0x8] sm:$0xf]
      %v357 = vld [vmem:[%s353 + $0xc] sm:$0xf]
      %v358 = vld [vmem:[%s353 + $0x10] sm:$0xf]
      %v359 = vld [vmem:[%s353 + $0x14] sm:$0xf]
      %v360 = vld [vmem:[%s353 + $0x18] sm:$0xf]
      %v361 = vld [vmem:[%s353 + $0x1c] sm:$0xf]
      %v362 = vld [vmem:[%s353 + $0x20] sm:$0xf]
      %v363 = vld [vmem:[%s353 + $0x24] sm:$0xf]
      %v364 = vld [vmem:[%s353 + $0x28] sm:$0xf]
      %v365 = vld [vmem:[%s353 + $0x2c] sm:$0xf]
      %v366 = vld [vmem:[%s353 + $0x30] sm:$0xf]
      %v367 = vld [vmem:[%s353 + $0x34] sm:$0xf]
      %v368 = vld [vmem:[%s353 + $0x38] sm:$0xf]
      %v369 = vld [vmem:[%s353 + $0x3c] sm:$0xf]
      %v402 = vunpack.c.l.b16 %v318
      %v403 = vunpack.c.l.b16 %v319
      %v404 = vunpack.c.l.b16 %v320
      %v405 = vunpack.c.l.b16 %v321
      %v406 = vunpack.c.l.b16 %v322
      %v407 = vunpack.c.l.b16 %v323
      %v408 = vunpack.c.l.b16 %v324
      %v409 = vunpack.c.l.b16 %v325
      %v410 = vunpack.c.l.b16 %v326
      %v411 = vunpack.c.l.b16 %v327
      %v412 = vunpack.c.l.b16 %v328
      %v413 = vunpack.c.l.b16 %v329
      %v414 = vunpack.c.l.b16 %v330
      %v415 = vunpack.c.l.b16 %v331
      %v416 = vunpack.c.l.b16 %v332
      %v417 = vunpack.c.l.b16 %v333
      %v418 = vunpack.c.l.b16 %v334
      %v419 = vunpack.c.l.b16 %v335
      %v420 = vunpack.c.l.b16 %v336
      %v421 = vunpack.c.l.b16 %v337
      %v422 = vunpack.c.l.b16 %v338
      %v423 = vunpack.c.l.b16 %v339
      %v424 = vunpack.c.l.b16 %v340
      %v425 = vunpack.c.l.b16 %v341
      %v426 = vunpack.c.l.b16 %v342
      %v427 = vunpack.c.l.b16 %v343
      %v428 = vunpack.c.l.b16 %v344
      %v429 = vunpack.c.l.b16 %v345
      %v430 = vunpack.c.l.b16 %v346
      %v431 = vunpack.c.l.b16 %v347
      %v432 = vunpack.c.l.b16 %v348
      %v433 = vunpack.c.l.b16 %v349
      %v434 = vpack.c.b16 %v403, %v402
      %v435 = vpack.c.b16 %v405, %v404
      %v436 = vpack.c.b16 %v407, %v406
      %v437 = vpack.c.b16 %v409, %v408
      %v438 = vpack.c.b16 %v411, %v410
      %v439 = vpack.c.b16 %v413, %v412
      %v440 = vpack.c.b16 %v415, %v414
      %v441 = vpack.c.b16 %v417, %v416
      %v442 = vpack.c.b16 %v419, %v418
      %v443 = vpack.c.b16 %v421, %v420
      %v444 = vpack.c.b16 %v423, %v422
      %v445 = vpack.c.b16 %v425, %v424
      %v446 = vpack.c.b16 %v427, %v426
      %v447 = vpack.c.b16 %v429, %v428
      %v448 = vpack.c.b16 %v431, %v430
      %v449 = vpack.c.b16 %v433, %v432
      %v482 = vunpack.c.l.b16 %v354
      %v483 = vunpack.c.l.b16 %v355
      %v484 = vunpack.c.l.b16 %v356
      %v485 = vunpack.c.l.b16 %v357
      %v486 = vunpack.c.l.b16 %v358
      %v487 = vunpack.c.l.b16 %v359
      %v488 = vunpack.c.l.b16 %v360
      %v489 = vunpack.c.l.b16 %v361
      %v490 = vunpack.c.l.b16 %v362
      %v491 = vunpack.c.l.b16 %v363
      %v492 = vunpack.c.l.b16 %v364
      %v493 = vunpack.c.l.b16 %v365
      %v494 = vunpack.c.l.b16 %v366
      %v495 = vunpack.c.l.b16 %v367
      %v496 = vunpack.c.l.b16 %v368
      %v497 = vunpack.c.l.b16 %v369
      %v498 = vpack.c.b16 %v483, %v482
      %v499 = vpack.c.b16 %v485, %v484
      %v500 = vpack.c.b16 %v487, %v486
      %v501 = vpack.c.b16 %v489, %v488
      %v502 = vpack.c.b16 %v491, %v490
      %v503 = vpack.c.b16 %v493, %v492
      %v504 = vpack.c.b16 %v495, %v494
      %v505 = vpack.c.b16 %v497, %v496
      %514 = vmatprep.subr.bf16.mxu0 0
      %515 = vmatpush1.bf16.msra.mxu0 %v505
      %516 = vmatprep.subr.bf16.mxu0 0
      %517 = vmatpush1.bf16.msra.mxu0 %v504
      %518 = vmatprep.subr.bf16.mxu0 0
      %519 = vmatpush1.bf16.msra.mxu0 %v503
      %520 = vmatprep.subr.bf16.mxu0 0
      %521 = vmatpush1.bf16.msra.mxu0 %v502
      %522 = vmatprep.subr.bf16.mxu0 0
      %523 = vmatpush1.bf16.msra.mxu0 %v501
      %524 = vmatprep.subr.bf16.mxu0 0
      %525 = vmatpush1.bf16.msra.mxu0 %v500
      %526 = vmatprep.subr.bf16.mxu0 0
      %527 = vmatpush1.bf16.msra.mxu0 %v499
      %528 = vmatprep.subr.bf16.mxu0 0
      %529 = vmatpush1.bf16.msra.mxu0 %v498
      %530 = vmatprep.subr.bf16.mxu0 0
      %531 = vmatpush2.bf16.msra.mxu0 0
      %532 = vmatprep.subr.bf16.mxu0 0
      %533 = vmatpush2.bf16.msra.mxu0 0
      %534 = vmatprep.subr.bf16.mxu0 0
      %535 = vmatpush2.bf16.msra.mxu0 0
      %536 = vmatprep.subr.bf16.mxu0 0
      %537 = vmatpush2.bf16.msra.mxu0 0
      %538 = vmatprep.subr.bf16.mxu0 0
      %539 = vmatpush2.bf16.msra.mxu0 0
      %540 = vmatprep.subr.bf16.mxu0 0
      %541 = vmatpush2.bf16.msra.mxu0 0
      %542 = vmatprep.subr.bf16.mxu0 0
      %543 = vmatpush2.bf16.msra.mxu0 0
      %544 = vmatprep.subr.bf16.mxu0 0
      %545 = vmatpush2.bf16.msra.mxu0 0
      %546 = vmatprep.mubr.bf16.mxu0 0
      %547 = vmatmul.mubr.bf16.gmra.mxu0 %v434
      %v548 = vpop.f32.mrf.mxu0
      %v549 = vadd.f32 0.0, %v548
      %v550 = vpop.f32.mrf.mxu0
      %v551 = vpop.f32.mrf.mxu0
      %v552 = vadd.f32 0.0, %v551
      %v553 = vpop.f32.mrf.mxu0
      %554 = vmatprep.mubr.bf16.mxu0 0
      %555 = vmatmul.mubr.bf16.gmra.mxu0 %v435
      %v556 = vpop.f32.mrf.mxu0
      %v557 = vadd.f32 0.0, %v556
      %v558 = vpop.f32.mrf.mxu0
      %v559 = vpop.f32.mrf.mxu0
      %v560 = vadd.f32 0.0, %v559
      %v561 = vpop.f32.mrf.mxu0
      %562 = vmatprep.mubr.bf16.mxu0 0
      %563 = vmatmul.mubr.bf16.gmra.mxu0 %v436
      %v564 = vpop.f32.mrf.mxu0
      %v565 = vadd.f32 0.0, %v564
      %v566 = vpop.f32.mrf.mxu0
      %v567 = vpop.f32.mrf.mxu0
      %v568 = vadd.f32 0.0, %v567
      %v569 = vpop.f32.mrf.mxu0
      %570 = vmatprep.mubr.bf16.mxu0 0
      %571 = vmatmul.mubr.bf16.gmra.mxu0 %v437
      %v572 = vpop.f32.mrf.mxu0
      %v573 = vadd.f32 0.0, %v572
      %v574 = vpop.f32.mrf.mxu0
      %v575 = vpop.f32.mrf.mxu0
      %v576 = vadd.f32 0.0, %v575
      %v577 = vpop.f32.mrf.mxu0
      %578 = vmatprep.mubr.bf16.mxu0 0
      %579 = vmatmul.mubr.bf16.gmra.mxu0 %v438
      %v580 = vpop.f32.mrf.mxu0
      %v581 = vadd.f32 0.0, %v580
      %v582 = vpop.f32.mrf.mxu0
      %v583 = vpop.f32.mrf.mxu0
      %v584 = vadd.f32 0.0, %v583
      %v585 = vpop.f32.mrf.mxu0
      %586 = vmatprep.mubr.bf16.mxu0 0
      %587 = vmatmul.mubr.bf16.gmra.mxu0 %v439
      %v588 = vpop.f32.mrf.mxu0
      %v589 = vadd.f32 0.0, %v588
      %v590 = vpop.f32.mrf.mxu0
      %v591 = vpop.f32.mrf.mxu0
      %v592 = vadd.f32 0.0, %v591
      %v593 = vpop.f32.mrf.mxu0
      %594 = vmatprep.mubr.bf16.mxu0 0
      %595 = vmatmul.mubr.bf16.gmra.mxu0 %v440
      %v596 = vpop.f32.mrf.mxu0
      %v597 = vadd.f32 0.0, %v596
      %v598 = vpop.f32.mrf.mxu0
      %v599 = vpop.f32.mrf.mxu0
      %v600 = vadd.f32 0.0, %v599
      %v601 = vpop.f32.mrf.mxu0
      %602 = vmatprep.mubr.bf16.mxu0 0
      %603 = vmatmul.mubr.bf16.gmra.mxu0 %v441
      %v604 = vpop.f32.mrf.mxu0
      %v605 = vadd.f32 0.0, %v604
      %v606 = vpop.f32.mrf.mxu0
      %v607 = vpop.f32.mrf.mxu0
      %v608 = vadd.f32 0.0, %v607
      %v609 = vpop.f32.mrf.mxu0
      %610 = vmatprep.mubr.bf16.mxu0 0
      %611 = vmatmul.mubr.bf16.gmra.mxu0 %v442
      %v612 = vpop.f32.mrf.mxu0
      %v613 = vadd.f32 0.0, %v612
      %v614 = vpop.f32.mrf.mxu0
      %v615 = vpop.f32.mrf.mxu0
      %v616 = vadd.f32 0.0, %v615
      %v617 = vpop.f32.mrf.mxu0
      %618 = vmatprep.mubr.bf16.mxu0 0
      %619 = vmatmul.mubr.bf16.gmra.mxu0 %v443
      %v620 = vpop.f32.mrf.mxu0
      %v621 = vadd.f32 0.0, %v620
      %v622 = vpop.f32.mrf.mxu0
      %v623 = vpop.f32.mrf.mxu0
      %v624 = vadd.f32 0.0, %v623
      %v625 = vpop.f32.mrf.mxu0
      %626 = vmatprep.mubr.bf16.mxu0 0
      %627 = vmatmul.mubr.bf16.gmra.mxu0 %v444
      %v628 = vpop.f32.mrf.mxu0
      %v629 = vadd.f32 0.0, %v628
      %v630 = vpop.f32.mrf.mxu0
      %v631 = vpop.f32.mrf.mxu0
      %v632 = vadd.f32 0.0, %v631
      %v633 = vpop.f32.mrf.mxu0
      %634 = vmatprep.mubr.bf16.mxu0 0
      %635 = vmatmul.mubr.bf16.gmra.mxu0 %v445
      %v636 = vpop.f32.mrf.mxu0
      %v637 = vadd.f32 0.0, %v636
      %v638 = vpop.f32.mrf.mxu0
      %v639 = vpop.f32.mrf.mxu0
      %v640 = vadd.f32 0.0, %v639
      %v641 = vpop.f32.mrf.mxu0
      %642 = vmatprep.mubr.bf16.mxu0 0
      %643 = vmatmul.mubr.bf16.gmra.mxu0 %v446
      %v644 = vpop.f32.mrf.mxu0
      %v645 = vadd.f32 0.0, %v644
      %v646 = vpop.f32.mrf.mxu0
      %v647 = vpop.f32.mrf.mxu0
      %v648 = vadd.f32 0.0, %v647
      %v649 = vpop.f32.mrf.mxu0
      %650 = vmatprep.mubr.bf16.mxu0 0
      %651 = vmatmul.mubr.bf16.gmra.mxu0 %v447
      %v652 = vpop.f32.mrf.mxu0
      %v653 = vadd.f32 0.0, %v652
      %v654 = vpop.f32.mrf.mxu0
      %v655 = vpop.f32.mrf.mxu0
      %v656 = vadd.f32 0.0, %v655
      %v657 = vpop.f32.mrf.mxu0
      %658 = vmatprep.mubr.bf16.mxu0 0
      %659 = vmatmul.mubr.bf16.gmra.mxu0 %v448
      %v660 = vpop.f32.mrf.mxu0
      %v661 = vadd.f32 0.0, %v660
      %v662 = vpop.f32.mrf.mxu0
      %v663 = vpop.f32.mrf.mxu0
      %v664 = vadd.f32 0.0, %v663
      %v665 = vpop.f32.mrf.mxu0
      %666 = vmatprep.mubr.bf16.mxu0 0
      %667 = vmatmul.mubr.bf16.gmra.mxu0 %v449
      %v668 = vpop.f32.mrf.mxu0
      %v669 = vadd.f32 0.0, %v668
      %v670 = vpop.f32.mrf.mxu0
      %v671 = vpop.f32.mrf.mxu0
      %v672 = vadd.f32 0.0, %v671
      %v673 = vpop.f32.mrf.mxu0
      %674 = vdwg.mxu0
      %v675 = vadd.f32 %v286, %v549
      %v676 = vadd.f32 %v287, %v552
      %v677 = vadd.f32 %v288, %v557
      %v678 = vadd.f32 %v289, %v560
      %v679 = vadd.f32 %v290, %v565
      %v680 = vadd.f32 %v291, %v568
      %v681 = vadd.f32 %v292, %v573
      %v682 = vadd.f32 %v293, %v576
      %v683 = vadd.f32 %v294, %v581
      %v684 = vadd.f32 %v295, %v584
      %v685 = vadd.f32 %v296, %v589
      %v686 = vadd.f32 %v297, %v592
      %v687 = vadd.f32 %v298, %v597
      %v688 = vadd.f32 %v299, %v600
      %v689 = vadd.f32 %v300, %v605
      %v690 = vadd.f32 %v301, %v608
      %v691 = vadd.f32 %v302, %v613
      %v692 = vadd.f32 %v303, %v616
      %v693 = vadd.f32 %v304, %v621
      %v694 = vadd.f32 %v305, %v624
      %v695 = vadd.f32 %v306, %v629
      %v696 = vadd.f32 %v307, %v632
      %v697 = vadd.f32 %v308, %v637
      %v698 = vadd.f32 %v309, %v640
      %v699 = vadd.f32 %v310, %v645
      %v700 = vadd.f32 %v311, %v648
      %v701 = vadd.f32 %v312, %v653
      %v702 = vadd.f32 %v313, %v656
      %v703 = vadd.f32 %v314, %v661
      %v704 = vadd.f32 %v315, %v664
      %v705 = vadd.f32 %v316, %v669
      %v706 = vadd.f32 %v317, %v672
      %707 = vst [vmem:[#allocation2] sm:$0xff] %v675
      %708 = vst [vmem:[#allocation2 + $0x8] sm:$0xff] %v676
      %709 = vst [vmem:[#allocation2 + $0x10] sm:$0xff] %v677
      %710 = vst [vmem:[#allocation2 + $0x18] sm:$0xff] %v678
      %711 = vst [vmem:[#allocation2 + $0x20] sm:$0xff] %v679
      %712 = vst [vmem:[#allocation2 + $0x28] sm:$0xff] %v680
      %713 = vst [vmem:[#allocation2 + $0x30] sm:$0xff] %v681
      %714 = vst [vmem:[#allocation2 + $0x38] sm:$0xff] %v682
      %715 = vst [vmem:[#allocation2 + $0x40] sm:$0xff] %v683
      %716 = vst [vmem:[#allocation2 + $0x48] sm:$0xff] %v684
      %717 = vst [vmem:[#allocation2 + $0x50] sm:$0xff] %v685
      %718 = vst [vmem:[#allocation2 + $0x58] sm:$0xff] %v686
      %719 = vst [vmem:[#allocation2 + $0x60] sm:$0xff] %v687
      %720 = vst [vmem:[#allocation2 + $0x68] sm:$0xff] %v688
      %721 = vst [vmem:[#allocation2 + $0x70] sm:$0xff] %v689
      %722 = vst [vmem:[#allocation2 + $0x78] sm:$0xff] %v690
      %723 = vst [vmem:[#allocation2 + $0x80] sm:$0xff] %v691
      %724 = vst [vmem:[#allocation2 + $0x88] sm:$0xff] %v692
      %725 = vst [vmem:[#allocation2 + $0x90] sm:$0xff] %v693
      %726 = vst [vmem:[#allocation2 + $0x98] sm:$0xff] %v694
      %727 = vst [vmem:[#allocation2 + $0xa0] sm:$0xff] %v695
      %728 = vst [vmem:[#allocation2 + $0xa8] sm:$0xff] %v696
      %729 = vst [vmem:[#allocation2 + $0xb0] sm:$0xff] %v697
      %730 = vst [vmem:[#allocation2 + $0xb8] sm:$0xff] %v698
      %731 = vst [vmem:[#allocation2 + $0xc0] sm:$0xff] %v699
      %732 = vst [vmem:[#allocation2 + $0xc8] sm:$0xff] %v700
      %733 = vst [vmem:[#allocation2 + $0xd0] sm:$0xff] %v701
      %734 = vst [vmem:[#allocation2 + $0xd8] sm:$0xff] %v702
      %735 = vst [vmem:[#allocation2 + $0xe0] sm:$0xff] %v703
      %736 = vst [vmem:[#allocation2 + $0xe8] sm:$0xff] %v704
      %737 = vst [vmem:[#allocation2 + $0xf0] sm:$0xff] %v705
      %738 = vst [vmem:[#allocation2 + $0xf8] sm:$0xff] %v706
      // Predicated region
      $region33: #{bottleneck_psp_forward.7} parent=27 // pred_check
        %p739 = pneg %p249
      $region34: #{bottleneck_psp_forward.7} parent=27 // pred_check_branch
        %741 = sbr.rel (%p739) target = $region36
      $region35: #{bottleneck_psp_forward.7} parent=27 // pred_region
        %v742 = vld [vmem:[#allocation2] sm:$0xff]
        %v743 = vld [vmem:[#allocation2 + $0x8] sm:$0xff]
        %v744 = vld [vmem:[#allocation2 + $0x10] sm:$0xff]
        %v745 = vld [vmem:[#allocation2 + $0x18] sm:$0xff]
        %v746 = vld [vmem:[#allocation2 + $0x20] sm:$0xff]
        %v747 = vld [vmem:[#allocation2 + $0x28] sm:$0xff]
        %v748 = vld [vmem:[#allocation2 + $0x30] sm:$0xff]
        %v749 = vld [vmem:[#allocation2 + $0x38] sm:$0xff]
        %v750 = vld [vmem:[#allocation2 + $0x40] sm:$0xff]
        %v751 = vld [vmem:[#allocation2 + $0x48] sm:$0xff]
        %v752 = vld [vmem:[#allocation2 + $0x50] sm:$0xff]
        %v753 = vld [vmem:[#allocation2 + $0x58] sm:$0xff]
        %v754 = vld [vmem:[#allocation2 + $0x60] sm:$0xff]
        %v755 = vld [vmem:[#allocation2 + $0x68] sm:$0xff]
        %v756 = vld [vmem:[#allocation2 + $0x70] sm:$0xff]
        %v757 = vld [vmem:[#allocation2 + $0x78] sm:$0xff]
        %v758 = vld [vmem:[#allocation2 + $0x80] sm:$0xff]
        %v759 = vld [vmem:[#allocation2 + $0x88] sm:$0xff]
        %v760 = vld [vmem:[#allocation2 + $0x90] sm:$0xff]
        %v761 = vld [vmem:[#allocation2 + $0x98] sm:$0xff]
        %v762 = vld [vmem:[#allocation2 + $0xa0] sm:$0xff]
        %v763 = vld [vmem:[#allocation2 + $0xa8] sm:$0xff]
        %v764 = vld [vmem:[#allocation2 + $0xb0] sm:$0xff]
        %v765 = vld [vmem:[#allocation2 + $0xb8] sm:$0xff]
        %v766 = vld [vmem:[#allocation2 + $0xc0] sm:$0xff]
        %v767 = vld [vmem:[#allocation2 + $0xc8] sm:$0xff]
        %v768 = vld [vmem:[#allocation2 + $0xd0] sm:$0xff]
        %v769 = vld [vmem:[#allocation2 + $0xd8] sm:$0xff]
        %v770 = vld [vmem:[#allocation2 + $0xe0] sm:$0xff]
        %v771 = vld [vmem:[#allocation2 + $0xe8] sm:$0xff]
        %v772 = vld [vmem:[#allocation2 + $0xf0] sm:$0xff]
        %v773 = vld [vmem:[#allocation2 + $0xf8] sm:$0xff]
        %v774 = vpack.c.bf16 %v743, %v742
        %v775 = vpack.c.bf16 %v745, %v744
        %v776 = vpack.c.bf16 %v747, %v746
        %v777 = vpack.c.bf16 %v749, %v748
        %v778 = vpack.c.bf16 %v751, %v750
        %v779 = vpack.c.bf16 %v753, %v752
        %v780 = vpack.c.bf16 %v755, %v754
        %v781 = vpack.c.bf16 %v757, %v756
        %v782 = vpack.c.bf16 %v759, %v758
        %v783 = vpack.c.bf16 %v761, %v760
        %v784 = vpack.c.bf16 %v763, %v762
        %v785 = vpack.c.bf16 %v765, %v764
        %v786 = vpack.c.bf16 %v767, %v766
        %v787 = vpack.c.bf16 %v769, %v768
        %v788 = vpack.c.bf16 %v771, %v770
        %v789 = vpack.c.bf16 %v773, %v772
        %v806 = vunpack.c.l.b16 %v774
        %v807 = vunpack.c.h.b16 %v774
        %v808 = vunpack.c.l.b16 %v775
        %v809 = vunpack.c.h.b16 %v775
        %v810 = vunpack.c.l.b16 %v776
        %v811 = vunpack.c.h.b16 %v776
        %v812 = vunpack.c.l.b16 %v777
        %v813 = vunpack.c.h.b16 %v777
        %v814 = vunpack.c.l.b16 %v778
        %v815 = vunpack.c.h.b16 %v778
        %v816 = vunpack.c.l.b16 %v779
        %v817 = vunpack.c.h.b16 %v779
        %v818 = vunpack.c.l.b16 %v780
        %v819 = vunpack.c.h.b16 %v780
        %v820 = vunpack.c.l.b16 %v781
        %v821 = vunpack.c.h.b16 %v781
        %v822 = vunpack.c.l.b16 %v782
        %v823 = vunpack.c.h.b16 %v782
        %v824 = vunpack.c.l.b16 %v783
        %v825 = vunpack.c.h.b16 %v783
        %v826 = vunpack.c.l.b16 %v784
        %v827 = vunpack.c.h.b16 %v784
        %v828 = vunpack.c.l.b16 %v785
        %v829 = vunpack.c.h.b16 %v785
        %v830 = vunpack.c.l.b16 %v786
        %v831 = vunpack.c.h.b16 %v786
        %v832 = vunpack.c.l.b16 %v787
        %v833 = vunpack.c.h.b16 %v787
        %v834 = vunpack.c.l.b16 %v788
        %v835 = vunpack.c.h.b16 %v788
        %v836 = vunpack.c.l.b16 %v789
        %v837 = vunpack.c.h.b16 %v789
        %v838 = vpack.c.b16 %v806, %v806
        %v839 = vpack.c.b16 %v807, %v807
        %v840 = vpack.c.b16 %v808, %v808
        %v841 = vpack.c.b16 %v809, %v809
        %v842 = vpack.c.b16 %v810, %v810
        %v843 = vpack.c.b16 %v811, %v811
        %v844 = vpack.c.b16 %v812, %v812
        %v845 = vpack.c.b16 %v813, %v813
        %v846 = vpack.c.b16 %v814, %v814
        %v847 = vpack.c.b16 %v815, %v815
        %v848 = vpack.c.b16 %v816, %v816
        %v849 = vpack.c.b16 %v817, %v817
        %v850 = vpack.c.b16 %v818, %v818
        %v851 = vpack.c.b16 %v819, %v819
        %v852 = vpack.c.b16 %v820, %v820
        %v853 = vpack.c.b16 %v821, %v821
        %v854 = vpack.c.b16 %v822, %v822
        %v855 = vpack.c.b16 %v823, %v823
        %v856 = vpack.c.b16 %v824, %v824
        %v857 = vpack.c.b16 %v825, %v825
        %v858 = vpack.c.b16 %v826, %v826
        %v859 = vpack.c.b16 %v827, %v827
        %v860 = vpack.c.b16 %v828, %v828
        %v861 = vpack.c.b16 %v829, %v829
        %v862 = vpack.c.b16 %v830, %v830
        %v863 = vpack.c.b16 %v831, %v831
        %v864 = vpack.c.b16 %v832, %v832
        %v865 = vpack.c.b16 %v833, %v833
        %v866 = vpack.c.b16 %v834, %v834
        %v867 = vpack.c.b16 %v835, %v835
        %v868 = vpack.c.b16 %v836, %v836
        %v869 = vpack.c.b16 %v837, %v837
        %902 = vst [vmem:[%s239] sm:$0xf] %v838
        %903 = vst [vmem:[%s239 + $0x4] sm:$0xf] %v839
        %904 = vst [vmem:[%s239 + $0x8] sm:$0xf] %v840
        %905 = vst [vmem:[%s239 + $0xc] sm:$0xf] %v841
        %906 = vst [vmem:[%s239 + $0x10] sm:$0xf] %v842
        %907 = vst [vmem:[%s239 + $0x14] sm:$0xf] %v843
        %908 = vst [vmem:[%s239 + $0x18] sm:$0xf] %v844
        %909 = vst [vmem:[%s239 + $0x1c] sm:$0xf] %v845
        %910 = vst [vmem:[%s239 + $0x20] sm:$0xf] %v846
        %911 = vst [vmem:[%s239 + $0x24] sm:$0xf] %v847
        %912 = vst [vmem:[%s239 + $0x28] sm:$0xf] %v848
        %913 = vst [vmem:[%s239 + $0x2c] sm:$0xf] %v849
        %914 = vst [vmem:[%s239 + $0x30] sm:$0xf] %v850
        %915 = vst [vmem:[%s239 + $0x34] sm:$0xf] %v851
        %916 = vst [vmem:[%s239 + $0x38] sm:$0xf] %v852
        %917 = vst [vmem:[%s239 + $0x3c] sm:$0xf] %v853
        %918 = vst [vmem:[%s239 + $0x40] sm:$0xf] %v854
        %919 = vst [vmem:[%s239 + $0x44] sm:$0xf] %v855
        %920 = vst [vmem:[%s239 + $0x48] sm:$0xf] %v856
        %921 = vst [vmem:[%s239 + $0x4c] sm:$0xf] %v857
        %922 = vst [vmem:[%s239 + $0x50] sm:$0xf] %v858
        %923 = vst [vmem:[%s239 + $0x54] sm:$0xf] %v859
        %924 = vst [vmem:[%s239 + $0x58] sm:$0xf] %v860
        %925 = vst [vmem:[%s239 + $0x5c] sm:$0xf] %v861
        %926 = vst [vmem:[%s239 + $0x60] sm:$0xf] %v862
        %927 = vst [vmem:[%s239 + $0x64] sm:$0xf] %v863
        %928 = vst [vmem:[%s239 + $0x68] sm:$0xf] %v864
        %929 = vst [vmem:[%s239 + $0x6c] sm:$0xf] %v865
        %930 = vst [vmem:[%s239 + $0x70] sm:$0xf] %v866
        %931 = vst [vmem:[%s239 + $0x74] sm:$0xf] %v867
        %932 = vst [vmem:[%s239 + $0x78] sm:$0xf] %v868
        %933 = vst [vmem:[%s239 + $0x7c] sm:$0xf] %v869
        %v934 = vadd.f32 %v742, %v743
        %v935 = vadd.f32 %v934, %v744
        %v936 = vadd.f32 %v935, %v745
        %v937 = vadd.f32 %v936, %v746
        %v938 = vadd.f32 %v937, %v747
        %v939 = vadd.f32 %v938, %v748
        %v940 = vadd.f32 %v939, %v749
        %v941 = vadd.f32 %v940, %v750
        %v942 = vadd.f32 %v941, %v751
        %v943 = vadd.f32 %v942, %v752
        %v944 = vadd.f32 %v943, %v753
        %v945 = vadd.f32 %v944, %v754
        %v946 = vadd.f32 %v945, %v755
        %v947 = vadd.f32 %v946, %v756
        %v948 = vadd.f32 %v947, %v757
        %v949 = vadd.f32 %v948, %v758
        %v950 = vadd.f32 %v949, %v759
        %v951 = vadd.f32 %v950, %v760
        %v952 = vadd.f32 %v951, %v761
        %v953 = vadd.f32 %v952, %v762
        %v954 = vadd.f32 %v953, %v763
        %v955 = vadd.f32 %v954, %v764
        %v956 = vadd.f32 %v955, %v765
        %v957 = vadd.f32 %v956, %v766
        %v958 = vadd.f32 %v957, %v767
        %v959 = vadd.f32 %v958, %v768
        %v960 = vadd.f32 %v959, %v769
        %v961 = vadd.f32 %v960, %v770
        %v962 = vadd.f32 %v961, %v771
        %v963 = vadd.f32 %v962, %v772
        %v964 = vadd.f32 %v963, %v773
        %v965 = vrot.slane %v964, 4
        %v966 = vadd.f32 %v964, %v965
        %v967 = vrot.slane %v966, 2
        %v968 = vadd.f32 %v966, %v967
        %v969 = vrot.slane %v968, 1
        %v970 = vadd.f32 %v968, %v969
        %v971 = vmul.f32 %v742, %v742
        %v972 = vmul.f32 %v743, %v743
        %v973 = vmul.f32 %v744, %v744
        %v974 = vmul.f32 %v745, %v745
        %v975 = vmul.f32 %v746, %v746
        %v976 = vmul.f32 %v747, %v747
        %v977 = vmul.f32 %v748, %v748
        %v978 = vmul.f32 %v749, %v749
        %v979 = vmul.f32 %v750, %v750
        %v980 = vmul.f32 %v751, %v751
        %v981 = vmul.f32 %v752, %v752
        %v982 = vmul.f32 %v753, %v753
        %v983 = vmul.f32 %v754, %v754
        %v984 = vmul.f32 %v755, %v755
        %v985 = vmul.f32 %v756, %v756
        %v986 = vmul.f32 %v757, %v757
        %v987 = vmul.f32 %v758, %v758
        %v988 = vmul.f32 %v759, %v759
        %v989 = vmul.f32 %v760, %v760
        %v990 = vmul.f32 %v761, %v761
        %v991 = vmul.f32 %v762, %v762
        %v992 = vmul.f32 %v763, %v763
        %v993 = vmul.f32 %v764, %v764
        %v994 = vmul.f32 %v765, %v765
        %v995 = vmul.f32 %v766, %v766
        %v996 = vmul.f32 %v767, %v767
        %v997 = vmul.f32 %v768, %v768
        %v998 = vmul.f32 %v769, %v769
        %v999 = vmul.f32 %v770, %v770
        %v1000 = vmul.f32 %v771, %v771
        %v1001 = vmul.f32 %v772, %v772
        %v1002 = vmul.f32 %v773, %v773
        %v1003 = vadd.f32 %v971, %v972
        %v1004 = vadd.f32 %v1003, %v973
        %v1005 = vadd.f32 %v1004, %v974
        %v1006 = vadd.f32 %v1005, %v975
        %v1007 = vadd.f32 %v1006, %v976
        %v1008 = vadd.f32 %v1007, %v977
        %v1009 = vadd.f32 %v1008, %v978
        %v1010 = vadd.f32 %v1009, %v979
        %v1011 = vadd.f32 %v1010, %v980
        %v1012 = vadd.f32 %v1011, %v981
        %v1013 = vadd.f32 %v1012, %v982
        %v1014 = vadd.f32 %v1013, %v983
        %v1015 = vadd.f32 %v1014, %v984
        %v1016 = vadd.f32 %v1015, %v985
        %v1017 = vadd.f32 %v1016, %v986
        %v1018 = vadd.f32 %v1017, %v987
        %v1019 = vadd.f32 %v1018, %v988
        %v1020 = vadd.f32 %v1019, %v989
        %v1021 = vadd.f32 %v1020, %v990
        %v1022 = vadd.f32 %v1021, %v991
        %v1023 = vadd.f32 %v1022, %v992
        %v1024 = vadd.f32 %v1023, %v993
        %v1025 = vadd.f32 %v1024, %v994
        %v1026 = vadd.f32 %v1025, %v995
        %v1027 = vadd.f32 %v1026, %v996
        %v1028 = vadd.f32 %v1027, %v997
        %v1029 = vadd.f32 %v1028, %v998
        %v1030 = vadd.f32 %v1029, %v999
        %v1031 = vadd.f32 %v1030, %v1000
        %v1032 = vadd.f32 %v1031, %v1001
        %v1033 = vadd.f32 %v1032, %v1002
        %v1034 = vrot.slane %v1033, 4
        %v1035 = vadd.f32 %v1033, %v1034
        %v1036 = vrot.slane %v1035, 2
        %v1037 = vadd.f32 %v1035, %v1036
        %v1038 = vrot.slane %v1037, 1
        %v1039 = vadd.f32 %v1037, %v1038
        %vm1040 = vcmask 1040384
        %v1041 = vsel %vm1040, %v970, %v1039
        %1042 = vst [vmem:[%s247] sm:$0x3] %v1041
      $region36: #{bottleneck_psp_forward.7} parent=27 // pred_fallthru
        _
      %s1043 = smul.u32 32, %s21
      %p1044 = scmp.lt.s32.totalorder %s1043, 63
      %s1045 = scalar_select %p1044, %s1043, 63
      %p1046 = scmp.lt.s32.totalorder %s20, 0
      %s1047 = scalar_select %p1046, %s20, 0
      %s1048 = sadd.s32 %s1047, %s1045
      %s1049 = smul.addr %s1048, 4
      %s1050 = scalar_lea.vmem %s2, %s1049
      %p1051 = scmp.lt.s32.totalorder %s21, 1
      %s1052 = scalar_select %p1051, %s21, 1
      %p1053 = scmp.lt.s32.totalorder %s20, 0
      %s1054 = scalar_select %p1053, %s20, 0
      %s1055 = sadd.s32 %s1054, %s1052
      %s1056 = smul.addr %s1055, 2
      %s1057 = scalar_lea.vmem %s3, %s1056
      // Predicated region
      $region37: #{bottleneck_psp_forward.7} parent=27 // pred_check
        %p1058 = pneg %p108
      $region38: #{bottleneck_psp_forward.7} parent=27 // pred_check_branch
        %1060 = sbr.rel (%p1058) target = $region40
      $region39: #{bottleneck_psp_forward.7} parent=27 // pred_region
        %s1061 = smul.u32 32, %s21
      $region40: #{bottleneck_psp_forward.7} parent=27 // pred_fallthru
        _
      // Predicated region
      $region41: #{bottleneck_psp_forward.7} parent=27 // pred_check
        %p1062 = pneg %p136
      $region42: #{bottleneck_psp_forward.7} parent=27 // pred_check_branch
        %1064 = sbr.rel (%p1062) target = $region44
      $region43: #{bottleneck_psp_forward.7} parent=27 // pred_region
        _
      $region44: #{bottleneck_psp_forward.7} parent=27 // pred_fallthru
        _
    $region28: #{bottleneck_psp_forward.7} parent=5 // pred_fallthru
      _
    %p1065 = scmp.le.s32.totalorder 2, %s10
    // Predicated region
    $region45: #{bottleneck_psp_forward.7} parent=5 // pred_check
      %p1066 = pneg %p1065
    $region46: #{bottleneck_psp_forward.7} parent=5 // pred_check_branch
      %1068 = sbr.rel (%p1066) target = $region48
    $region47: #{bottleneck_psp_forward.7} parent=5 // pred_region
      %s1069 = ssub.s32 %s10, 2
      // Predicated region
      $region49: #{bottleneck_psp_forward.7} parent=47 // pred_check
        %p1070 = pneg %p114
      $region50: #{bottleneck_psp_forward.7} parent=47 // pred_check_branch
        %1072 = sbr.rel (%p1070) target = $region52
      $region51: #{bottleneck_psp_forward.7} parent=47 // pred_region
        %s1073 = smul.u32 32, %s24
        %p1074 = scmp.lt.s32.totalorder %s1073, 63
        %s1075 = scalar_select %p1074, %s1073, 63
        %p1076 = scmp.lt.s32.totalorder %s23, 0
        %s1077 = scalar_select %p1076, %s23, 0
        %s1078 = sadd.s32 %s1077, %s1075
        %s1079 = smul.addr %s1078, 4
        %s1080 = scalar_lea.vmem %s2, %s1079
      $region52: #{bottleneck_psp_forward.7} parent=47 // pred_fallthru
        _
      // Predicated region
      $region53: #{bottleneck_psp_forward.7} parent=47 // pred_check
        %p1081 = pneg %p142
      $region54: #{bottleneck_psp_forward.7} parent=47 // pred_check_branch
        %1083 = sbr.rel (%p1081) target = $region56
      $region55: #{bottleneck_psp_forward.7} parent=47 // pred_region
        %p1084 = scmp.lt.s32.totalorder %s24, 1
        %s1085 = scalar_select %p1084, %s24, 1
        %p1086 = scmp.lt.s32.totalorder %s23, 0
        %s1087 = scalar_select %p1086, %s23, 0
        %s1088 = sadd.s32 %s1087, %s1085
        %s1089 = smul.addr %s1088, 2
        %s1090 = scalar_lea.vmem %s3, %s1089
      $region56: #{bottleneck_psp_forward.7} parent=47 // pred_fallthru
        _
    $region48: #{bottleneck_psp_forward.7} parent=5 // pred_fallthru
      _
  $region6: #{bottleneck_psp_forward.7} parent=0 // loop_footer
    %s14 = sadd.s32 1, %s10
  $region7: #{bottleneck_psp_forward.7} parent=0 // loop_footer_branch
    %9 = sbr.rel target = $region3
  $region8: #{bottleneck_psp_forward.7} parent=0 // loop_exit
    _

// kernel: bottleneck_psp_forward.13
$region0: #{bottleneck_psp_forward.13}
  #allocation0 [shape = 'u32[]', space=smem, size = 0x4, offset = 0x4, fixed_abs, tag = 'smem constant byte address 0x4 - core index']
  #allocation1 [shape = 'u32[144,128]{1,0:T(1,128)}', space=vmem, size = 0x12000, scoped, tag = 'internal scratch']
  %s0 = inlined_call_operand.vmem [shape: bf16[512,128], index: 0, kind: input, shape index: {}]
  %s1 = inlined_call_operand.vmem [shape: f32[1,128], index: 1, kind: input, shape index: {}]
  %s2 = inlined_call_operand.vmem [shape: f32[1,128], index: 2, kind: input, shape index: {}]
  %s3 = inlined_call_operand.vmem [shape: bf16[512,128], index: 3, kind: input, shape index: {}]
  %s4 = inlined_call_operand.vmem [shape: f32[1,128], index: 4, kind: input, shape index: {}]
  %s5 = inlined_call_operand.vmem [shape: f32[1,128], index: 5, kind: input, shape index: {}]
  %s6 = inlined_call_operand.hbm [shape: f32[512,128], index: 6, kind: output, shape index: {}]
  %s7 = sld [smem:[#allocation0]]
  $region34: #{bottleneck_psp_forward.13} parent=0
    _
  %s9 = ssub.s32 1, %s7
  %s10 = scalar_select 0, %s9, %s7
  $region1: #{bottleneck_psp_forward.13} parent=0
    #allocation2 [shape = 'u8[262144]{0}', space=vmem, size = 0x40000, scoped, tag = 'output window, operand 0, single buffered']
    #allocation3 [shape = 's32[1]{0}', space=sflag, size = 0x4, scoped, tag = 'scoped memory for bottleneck_psp_forward.13']
    %11 = vsyncpa [#allocation3], 0
    // Predicated region
    $region2: #{bottleneck_psp_forward.13} parent=1 // pred_check
      _
    $region3: #{bottleneck_psp_forward.13} parent=1 // pred_check_branch
      %13 = sbr.rel (0) target = $region5
    $region4: #{bottleneck_psp_forward.13} parent=1 // pred_region
      _
    $region5: #{bottleneck_psp_forward.13} parent=1 // pred_fallthru
      _
    // Predicated region
    $region6: #{bottleneck_psp_forward.13} parent=1 // pred_check
      _
    $region7: #{bottleneck_psp_forward.13} parent=1 // pred_check_branch
      %15 = sbr.rel (0) target = $region9
    $region8: #{bottleneck_psp_forward.13} parent=1 // pred_region
      _
    $region9: #{bottleneck_psp_forward.13} parent=1 // pred_fallthru
      _
    // Predicated region
    $region10: #{bottleneck_psp_forward.13} parent=1 // pred_check
      _
    $region11: #{bottleneck_psp_forward.13} parent=1 // pred_check_branch
      %17 = sbr.rel (0) target = $region13
    $region12: #{bottleneck_psp_forward.13} parent=1 // pred_region
      _
    $region13: #{bottleneck_psp_forward.13} parent=1 // pred_fallthru
      _
    // Predicated region
    $region14: #{bottleneck_psp_forward.13} parent=1 // pred_check
      _
    $region15: #{bottleneck_psp_forward.13} parent=1 // pred_check_branch
      %19 = sbr.rel (0) target = $region17
    $region16: #{bottleneck_psp_forward.13} parent=1 // pred_region
      _
    $region17: #{bottleneck_psp_forward.13} parent=1 // pred_fallthru
      _
    // Predicated region
    $region18: #{bottleneck_psp_forward.13} parent=1 // pred_check
      _
    $region19: #{bottleneck_psp_forward.13} parent=1 // pred_check_branch
      %21 = sbr.rel (0) target = $region21
    $region20: #{bottleneck_psp_forward.13} parent=1 // pred_region
      _
    $region21: #{bottleneck_psp_forward.13} parent=1 // pred_fallthru
      _
    // Predicated region
    $region22: #{bottleneck_psp_forward.13} parent=1 // pred_check
      _
    $region23: #{bottleneck_psp_forward.13} parent=1 // pred_check_branch
      %23 = sbr.rel (0) target = $region25
    $region24: #{bottleneck_psp_forward.13} parent=1 // pred_region
      _
    $region25: #{bottleneck_psp_forward.13} parent=1 // pred_fallthru
      _
    %v24 = vld [vmem:[%s0] sm:$0xf]
    %v25 = vld [vmem:[%s0 + $0x4] sm:$0xf]
    %v26 = vld [vmem:[%s0 + $0x8] sm:$0xf]
    %v27 = vld [vmem:[%s0 + $0xc] sm:$0xf]
    %v28 = vld [vmem:[%s0 + $0x10] sm:$0xf]
    %v29 = vld [vmem:[%s0 + $0x14] sm:$0xf]
    %v30 = vld [vmem:[%s0 + $0x18] sm:$0xf]
    %v31 = vld [vmem:[%s0 + $0x1c] sm:$0xf]
    %v32 = vld [vmem:[%s0 + $0x20] sm:$0xf]
    %v33 = vld [vmem:[%s0 + $0x24] sm:$0xf]
    %v34 = vld [vmem:[%s0 + $0x28] sm:$0xf]
    %v35 = vld [vmem:[%s0 + $0x2c] sm:$0xf]
    %v36 = vld [vmem:[%s0 + $0x30] sm:$0xf]
    %v37 = vld [vmem:[%s0 + $0x34] sm:$0xf]
    %v38 = vld [vmem:[%s0 + $0x38] sm:$0xf]
    %v39 = vld [vmem:[%s0 + $0x3c] sm:$0xf]
    %v40 = vld [vmem:[%s0 + $0x40] sm:$0xf]
    %v41 = vld [vmem:[%s0 + $0x44] sm:$0xf]
    %v42 = vld [vmem:[%s0 + $0x48] sm:$0xf]
    %v43 = vld [vmem:[%s0 + $0x4c] sm:$0xf]
    %v44 = vld [vmem:[%s0 + $0x50] sm:$0xf]
    %v45 = vld [vmem:[%s0 + $0x54] sm:$0xf]
    %v46 = vld [vmem:[%s0 + $0x58] sm:$0xf]
    %v47 = vld [vmem:[%s0 + $0x5c] sm:$0xf]
    %v48 = vld [vmem:[%s0 + $0x60] sm:$0xf]
    %v49 = vld [vmem:[%s0 + $0x64] sm:$0xf]
    %v50 = vld [vmem:[%s0 + $0x68] sm:$0xf]
    %v51 = vld [vmem:[%s0 + $0x6c] sm:$0xf]
    %v52 = vld [vmem:[%s0 + $0x70] sm:$0xf]
    %v53 = vld [vmem:[%s0 + $0x74] sm:$0xf]
    %v54 = vld [vmem:[%s0 + $0x78] sm:$0xf]
    %v55 = vld [vmem:[%s0 + $0x7c] sm:$0xf]
    %v56 = vld [vmem:[%s0 + $0x80] sm:$0xf]
    %v57 = vld [vmem:[%s0 + $0x84] sm:$0xf]
    %v58 = vld [vmem:[%s0 + $0x88] sm:$0xf]
    %v59 = vld [vmem:[%s0 + $0x8c] sm:$0xf]
    %v60 = vld [vmem:[%s0 + $0x90] sm:$0xf]
    %v61 = vld [vmem:[%s0 + $0x94] sm:$0xf]
    %v62 = vld [vmem:[%s0 + $0x98] sm:$0xf]
    %v63 = vld [vmem:[%s0 + $0x9c] sm:$0xf]
    %v64 = vld [vmem:[%s0 + $0xa0] sm:$0xf]
    %v65 = vld [vmem:[%s0 + $0xa4] sm:$0xf]
    %v66 = vld [vmem:[%s0 + $0xa8] sm:$0xf]
    %v67 = vld [vmem:[%s0 + $0xac] sm:$0xf]
    %v68 = vld [vmem:[%s0 + $0xb0] sm:$0xf]
    %v69 = vld [vmem:[%s0 + $0xb4] sm:$0xf]
    %v70 = vld [vmem:[%s0 + $0xb8] sm:$0xf]
    %v71 = vld [vmem:[%s0 + $0xbc] sm:$0xf]
    %v72 = vld [vmem:[%s0 + $0xc0] sm:$0xf]
    %v73 = vld [vmem:[%s0 + $0xc4] sm:$0xf]
    %v74 = vld [vmem:[%s0 + $0xc8] sm:$0xf]
    %v75 = vld [vmem:[%s0 + $0xcc] sm:$0xf]
    %v76 = vld [vmem:[%s0 + $0xd0] sm:$0xf]
    %v77 = vld [vmem:[%s0 + $0xd4] sm:$0xf]
    %v78 = vld [vmem:[%s0 + $0xd8] sm:$0xf]
    %v79 = vld [vmem:[%s0 + $0xdc] sm:$0xf]
    %v80 = vld [vmem:[%s0 + $0xe0] sm:$0xf]
    %v81 = vld [vmem:[%s0 + $0xe4] sm:$0xf]
    %v82 = vld [vmem:[%s0 + $0xe8] sm:$0xf]
    %v83 = vld [vmem:[%s0 + $0xec] sm:$0xf]
    %v84 = vld [vmem:[%s0 + $0xf0] sm:$0xf]
    %v85 = vld [vmem:[%s0 + $0xf4] sm:$0xf]
    %v86 = vld [vmem:[%s0 + $0xf8] sm:$0xf]
    %v87 = vld [vmem:[%s0 + $0xfc] sm:$0xf]
    %v88 = vunpack.c.l.bf16 %v24
    %v89 = vunpack.c.l.bf16 %v25
    %v90 = vunpack.c.l.bf16 %v26
    %v91 = vunpack.c.l.bf16 %v27
    %v92 = vunpack.c.l.bf16 %v28
    %v93 = vunpack.c.l.bf16 %v29
    %v94 = vunpack.c.l.bf16 %v30
    %v95 = vunpack.c.l.bf16 %v31
    %v96 = vunpack.c.l.bf16 %v32
    %v97 = vunpack.c.l.bf16 %v33
    %v98 = vunpack.c.l.bf16 %v34
    %v99 = vunpack.c.l.bf16 %v35
    %v100 = vunpack.c.l.bf16 %v36
    %v101 = vunpack.c.l.bf16 %v37
    %v102 = vunpack.c.l.bf16 %v38
    %v103 = vunpack.c.l.bf16 %v39
    %v104 = vunpack.c.l.bf16 %v40
    %v105 = vunpack.c.l.bf16 %v41
    %v106 = vunpack.c.l.bf16 %v42
    %v107 = vunpack.c.l.bf16 %v43
    %v108 = vunpack.c.l.bf16 %v44
    %v109 = vunpack.c.l.bf16 %v45
    %v110 = vunpack.c.l.bf16 %v46
    %v111 = vunpack.c.l.bf16 %v47
    %v112 = vunpack.c.l.bf16 %v48
    %v113 = vunpack.c.l.bf16 %v49
    %v114 = vunpack.c.l.bf16 %v50
    %v115 = vunpack.c.l.bf16 %v51
    %v116 = vunpack.c.l.bf16 %v52
    %v117 = vunpack.c.l.bf16 %v53
    %v118 = vunpack.c.l.bf16 %v54
    %v119 = vunpack.c.l.bf16 %v55
    %v120 = vunpack.c.l.bf16 %v56
    %v121 = vunpack.c.l.bf16 %v57
    %v122 = vunpack.c.l.bf16 %v58
    %v123 = vunpack.c.l.bf16 %v59
    %v124 = vunpack.c.l.bf16 %v60
    %v125 = vunpack.c.l.bf16 %v61
    %v126 = vunpack.c.l.bf16 %v62
    %v127 = vunpack.c.l.bf16 %v63
    %v128 = vunpack.c.l.bf16 %v64
    %v129 = vunpack.c.l.bf16 %v65
    %v130 = vunpack.c.l.bf16 %v66
    %v131 = vunpack.c.l.bf16 %v67
    %v132 = vunpack.c.l.bf16 %v68
    %v133 = vunpack.c.l.bf16 %v69
    %v134 = vunpack.c.l.bf16 %v70
    %v135 = vunpack.c.l.bf16 %v71
    %v136 = vunpack.c.l.bf16 %v72
    %v137 = vunpack.c.l.bf16 %v73
    %v138 = vunpack.c.l.bf16 %v74
    %v139 = vunpack.c.l.bf16 %v75
    %v140 = vunpack.c.l.bf16 %v76
    %v141 = vunpack.c.l.bf16 %v77
    %v142 = vunpack.c.l.bf16 %v78
    %v143 = vunpack.c.l.bf16 %v79
    %v144 = vunpack.c.l.bf16 %v80
    %v145 = vunpack.c.l.bf16 %v81
    %v146 = vunpack.c.l.bf16 %v82
    %v147 = vunpack.c.l.bf16 %v83
    %v148 = vunpack.c.l.bf16 %v84
    %v149 = vunpack.c.l.bf16 %v85
    %v150 = vunpack.c.l.bf16 %v86
    %v151 = vunpack.c.l.bf16 %v87
    %v152 = vld [vmem:[%s1] sm:$0x1]
    %v154 = vlaneseq
    %v155 = vshrl.u32 %v154, 7
    %v156 = vsub.s32 0, %v155
    %v157 = vrot.slane %v152, %v156
    %v159 = vmul.f32 %v88, %v157
    %v160 = vmul.f32 %v89, %v157
    %v161 = vmul.f32 %v90, %v157
    %v162 = vmul.f32 %v91, %v157
    %v163 = vmul.f32 %v92, %v157
    %v164 = vmul.f32 %v93, %v157
    %v165 = vmul.f32 %v94, %v157
    %v166 = vmul.f32 %v95, %v157
    %v167 = vmul.f32 %v96, %v157
    %v168 = vmul.f32 %v97, %v157
    %v169 = vmul.f32 %v98, %v157
    %v170 = vmul.f32 %v99, %v157
    %v171 = vmul.f32 %v100, %v157
    %v172 = vmul.f32 %v101, %v157
    %v173 = vmul.f32 %v102, %v157
    %v174 = vmul.f32 %v103, %v157
    %v175 = vmul.f32 %v104, %v157
    %v176 = vmul.f32 %v105, %v157
    %v177 = vmul.f32 %v106, %v157
    %v178 = vmul.f32 %v107, %v157
    %v179 = vmul.f32 %v108, %v157
    %v180 = vmul.f32 %v109, %v157
    %v181 = vmul.f32 %v110, %v157
    %v182 = vmul.f32 %v111, %v157
    %v183 = vmul.f32 %v112, %v157
    %v184 = vmul.f32 %v113, %v157
    %v185 = vmul.f32 %v114, %v157
    %v186 = vmul.f32 %v115, %v157
    %v187 = vmul.f32 %v116, %v157
    %v188 = vmul.f32 %v117, %v157
    %v189 = vmul.f32 %v118, %v157
    %v190 = vmul.f32 %v119, %v157
    %v191 = vmul.f32 %v120, %v157
    %v192 = vmul.f32 %v121, %v157
    %v193 = vmul.f32 %v122, %v157
    %v194 = vmul.f32 %v123, %v157
    %v195 = vmul.f32 %v124, %v157
    %v196 = vmul.f32 %v125, %v157
    %v197 = vmul.f32 %v126, %v157
    %v198 = vmul.f32 %v127, %v157
    %v199 = vmul.f32 %v128, %v157
    %v200 = vmul.f32 %v129, %v157
    %v201 = vmul.f32 %v130, %v157
    %v202 = vmul.f32 %v131, %v157
    %v203 = vmul.f32 %v132, %v157
    %v204 = vmul.f32 %v133, %v157
    %v205 = vmul.f32 %v134, %v157
    %v206 = vmul.f32 %v135, %v157
    %v207 = vmul.f32 %v136, %v157
    %v208 = vmul.f32 %v137, %v157
    %v209 = vmul.f32 %v138, %v157
    %v210 = vmul.f32 %v139, %v157
    %v211 = vmul.f32 %v140, %v157
    %v212 = vmul.f32 %v141, %v157
    %v213 = vmul.f32 %v142, %v157
    %v214 = vmul.f32 %v143, %v157
    %v215 = vmul.f32 %v144, %v157
    %v216 = vmul.f32 %v145, %v157
    %v217 = vmul.f32 %v146, %v157
    %v218 = vmul.f32 %v147, %v157
    %v219 = vmul.f32 %v148, %v157
    %v220 = vmul.f32 %v149, %v157
    %v221 = vmul.f32 %v150, %v157
    %v222 = vmul.f32 %v151, %v157
    %v223 = vld [vmem:[%s2] sm:$0x1]
    %v225 = vlaneseq
    %v226 = vshrl.u32 %v225, 7
    %v227 = vsub.s32 0, %v226
    %v228 = vrot.slane %v223, %v227
    %v230 = vadd.f32 %v159, %v228
    %v231 = vadd.f32 %v160, %v228
    %v232 = vadd.f32 %v161, %v228
    %v233 = vadd.f32 %v162, %v228
    %v234 = vadd.f32 %v163, %v228
    %v235 = vadd.f32 %v164, %v228
    %v236 = vadd.f32 %v165, %v228
    %v237 = vadd.f32 %v166, %v228
    %v238 = vadd.f32 %v167, %v228
    %v239 = vadd.f32 %v168, %v228
    %v240 = vadd.f32 %v169, %v228
    %v241 = vadd.f32 %v170, %v228
    %v242 = vadd.f32 %v171, %v228
    %v243 = vadd.f32 %v172, %v228
    %v244 = vadd.f32 %v173, %v228
    %v245 = vadd.f32 %v174, %v228
    %v246 = vadd.f32 %v175, %v228
    %v247 = vadd.f32 %v176, %v228
    %v248 = vadd.f32 %v177, %v228
    %v249 = vadd.f32 %v178, %v228
    %v250 = vadd.f32 %v179, %v228
    %v251 = vadd.f32 %v180, %v228
    %v252 = vadd.f32 %v181, %v228
    %v253 = vadd.f32 %v182, %v228
    %v254 = vadd.f32 %v183, %v228
    %v255 = vadd.f32 %v184, %v228
    %v256 = vadd.f32 %v185, %v228
    %v257 = vadd.f32 %v186, %v228
    %v258 = vadd.f32 %v187, %v228
    %v259 = vadd.f32 %v188, %v228
    %v260 = vadd.f32 %v189, %v228
    %v261 = vadd.f32 %v190, %v228
    %v262 = vadd.f32 %v191, %v228
    %v263 = vadd.f32 %v192, %v228
    %v264 = vadd.f32 %v193, %v228
    %v265 = vadd.f32 %v194, %v228
    %v266 = vadd.f32 %v195, %v228
    %v267 = vadd.f32 %v196, %v228
    %v268 = vadd.f32 %v197, %v228
    %v269 = vadd.f32 %v198, %v228
    %v270 = vadd.f32 %v199, %v228
    %v271 = vadd.f32 %v200, %v228
    %v272 = vadd.f32 %v201, %v228
    %v273 = vadd.f32 %v202, %v228
    %v274 = vadd.f32 %v203, %v228
    %v275 = vadd.f32 %v204, %v228
    %v276 = vadd.f32 %v205, %v228
    %v277 = vadd.f32 %v206, %v228
    %v278 = vadd.f32 %v207, %v228
    %v279 = vadd.f32 %v208, %v228
    %v280 = vadd.f32 %v209, %v228
    %v281 = vadd.f32 %v210, %v228
    %v282 = vadd.f32 %v211, %v228
    %v283 = vadd.f32 %v212, %v228
    %v284 = vadd.f32 %v213, %v228
    %v285 = vadd.f32 %v214, %v228
    %v286 = vadd.f32 %v215, %v228
    %v287 = vadd.f32 %v216, %v228
    %v288 = vadd.f32 %v217, %v228
    %v289 = vadd.f32 %v218, %v228
    %v290 = vadd.f32 %v219, %v228
    %v291 = vadd.f32 %v220, %v228
    %v292 = vadd.f32 %v221, %v228
    %v293 = vadd.f32 %v222, %v228
    %v294 = vld [vmem:[%s3] sm:$0xf]
    %v295 = vld [vmem:[%s3 + $0x4] sm:$0xf]
    %v296 = vld [vmem:[%s3 + $0x8] sm:$0xf]
    %v297 = vld [vmem:[%s3 + $0xc] sm:$0xf]
    %v298 = vld [vmem:[%s3 + $0x10] sm:$0xf]
    %v299 = vld [vmem:[%s3 + $0x14] sm:$0xf]
    %v300 = vld [vmem:[%s3 + $0x18] sm:$0xf]
    %v301 = vld [vmem:[%s3 + $0x1c] sm:$0xf]
    %v302 = vld [vmem:[%s3 + $0x20] sm:$0xf]
    %v303 = vld [vmem:[%s3 + $0x24] sm:$0xf]
    %v304 = vld [vmem:[%s3 + $0x28] sm:$0xf]
    %v305 = vld [vmem:[%s3 + $0x2c] sm:$0xf]
    %v306 = vld [vmem:[%s3 + $0x30] sm:$0xf]
    %v307 = vld [vmem:[%s3 + $0x34] sm:$0xf]
    %v308 = vld [vmem:[%s3 + $0x38] sm:$0xf]
    %v309 = vld [vmem:[%s3 + $0x3c] sm:$0xf]
    %v310 = vld [vmem:[%s3 + $0x40] sm:$0xf]
    %v311 = vld [vmem:[%s3 + $0x44] sm:$0xf]
    %v312 = vld [vmem:[%s3 + $0x48] sm:$0xf]
    %v313 = vld [vmem:[%s3 + $0x4c] sm:$0xf]
    %v314 = vld [vmem:[%s3 + $0x50] sm:$0xf]
    %v315 = vld [vmem:[%s3 + $0x54] sm:$0xf]
    %v316 = vld [vmem:[%s3 + $0x58] sm:$0xf]
    %v317 = vld [vmem:[%s3 + $0x5c] sm:$0xf]
    %v318 = vld [vmem:[%s3 + $0x60] sm:$0xf]
    %v319 = vld [vmem:[%s3 + $0x64] sm:$0xf]
    %v320 = vld [vmem:[%s3 + $0x68] sm:$0xf]
    %v321 = vld [vmem:[%s3 + $0x6c] sm:$0xf]
    %v322 = vld [vmem:[%s3 + $0x70] sm:$0xf]
    %v323 = vld [vmem:[%s3 + $0x74] sm:$0xf]
    %v324 = vld [vmem:[%s3 + $0x78] sm:$0xf]
    %v325 = vld [vmem:[%s3 + $0x7c] sm:$0xf]
    %v326 = vld [vmem:[%s3 + $0x80] sm:$0xf]
    %v327 = vld [vmem:[%s3 + $0x84] sm:$0xf]
    %v328 = vld [vmem:[%s3 + $0x88] sm:$0xf]
    %v329 = vld [vmem:[%s3 + $0x8c] sm:$0xf]
    %v330 = vld [vmem:[%s3 + $0x90] sm:$0xf]
    %v331 = vld [vmem:[%s3 + $0x94] sm:$0xf]
    %v332 = vld [vmem:[%s3 + $0x98] sm:$0xf]
    %v333 = vld [vmem:[%s3 + $0x9c] sm:$0xf]
    %v334 = vld [vmem:[%s3 + $0xa0] sm:$0xf]
    %v335 = vld [vmem:[%s3 + $0xa4] sm:$0xf]
    %v336 = vld [vmem:[%s3 + $0xa8] sm:$0xf]
    %v337 = vld [vmem:[%s3 + $0xac] sm:$0xf]
    %v338 = vld [vmem:[%s3 + $0xb0] sm:$0xf]
    %v339 = vld [vmem:[%s3 + $0xb4] sm:$0xf]
    %v340 = vld [vmem:[%s3 + $0xb8] sm:$0xf]
    %v341 = vld [vmem:[%s3 + $0xbc] sm:$0xf]
    %v342 = vld [vmem:[%s3 + $0xc0] sm:$0xf]
    %v343 = vld [vmem:[%s3 + $0xc4] sm:$0xf]
    %v344 = vld [vmem:[%s3 + $0xc8] sm:$0xf]
    %v345 = vld [vmem:[%s3 + $0xcc] sm:$0xf]
    %v346 = vld [vmem:[%s3 + $0xd0] sm:$0xf]
    %v347 = vld [vmem:[%s3 + $0xd4] sm:$0xf]
    %v348 = vld [vmem:[%s3 + $0xd8] sm:$0xf]
    %v349 = vld [vmem:[%s3 + $0xdc] sm:$0xf]
    %v350 = vld [vmem:[%s3 + $0xe0] sm:$0xf]
    %v351 = vld [vmem:[%s3 + $0xe4] sm:$0xf]
    %v352 = vld [vmem:[%s3 + $0xe8] sm:$0xf]
    %v353 = vld [vmem:[%s3 + $0xec] sm:$0xf]
    %v354 = vld [vmem:[%s3 + $0xf0] sm:$0xf]
    %v355 = vld [vmem:[%s3 + $0xf4] sm:$0xf]
    %v356 = vld [vmem:[%s3 + $0xf8] sm:$0xf]
    %v357 = vld [vmem:[%s3 + $0xfc] sm:$0xf]
    %v358 = vunpack.c.l.bf16 %v294
    %v359 = vunpack.c.l.bf16 %v295
    %v360 = vunpack.c.l.bf16 %v296
    %v361 = vunpack.c.l.bf16 %v297
    %v362 = vunpack.c.l.bf16 %v298
    %v363 = vunpack.c.l.bf16 %v299
    %v364 = vunpack.c.l.bf16 %v300
    %v365 = vunpack.c.l.bf16 %v301
    %v366 = vunpack.c.l.bf16 %v302
    %v367 = vunpack.c.l.bf16 %v303
    %v368 = vunpack.c.l.bf16 %v304
    %v369 = vunpack.c.l.bf16 %v305
    %v370 = vunpack.c.l.bf16 %v306
    %v371 = vunpack.c.l.bf16 %v307
    %v372 = vunpack.c.l.bf16 %v308
    %v373 = vunpack.c.l.bf16 %v309
    %v374 = vunpack.c.l.bf16 %v310
    %v375 = vunpack.c.l.bf16 %v311
    %v376 = vunpack.c.l.bf16 %v312
    %v377 = vunpack.c.l.bf16 %v313
    %v378 = vunpack.c.l.bf16 %v314
    %v379 = vunpack.c.l.bf16 %v315
    %v380 = vunpack.c.l.bf16 %v316
    %v381 = vunpack.c.l.bf16 %v317
    %v382 = vunpack.c.l.bf16 %v318
    %v383 = vunpack.c.l.bf16 %v319
    %v384 = vunpack.c.l.bf16 %v320
    %v385 = vunpack.c.l.bf16 %v321
    %v386 = vunpack.c.l.bf16 %v322
    %v387 = vunpack.c.l.bf16 %v323
    %v388 = vunpack.c.l.bf16 %v324
    %v389 = vunpack.c.l.bf16 %v325
    %v390 = vunpack.c.l.bf16 %v326
    %v391 = vunpack.c.l.bf16 %v327
    %v392 = vunpack.c.l.bf16 %v328
    %v393 = vunpack.c.l.bf16 %v329
    %v394 = vunpack.c.l.bf16 %v330
    %v395 = vunpack.c.l.bf16 %v331
    %v396 = vunpack.c.l.bf16 %v332
    %v397 = vunpack.c.l.bf16 %v333
    %v398 = vunpack.c.l.bf16 %v334
    %v399 = vunpack.c.l.bf16 %v335
    %v400 = vunpack.c.l.bf16 %v336
    %v401 = vunpack.c.l.bf16 %v337
    %v402 = vunpack.c.l.bf16 %v338
    %v403 = vunpack.c.l.bf16 %v339
    %v404 = vunpack.c.l.bf16 %v340
    %v405 = vunpack.c.l.bf16 %v341
    %v406 = vunpack.c.l.bf16 %v342
    %v407 = vunpack.c.l.bf16 %v343
    %v408 = vunpack.c.l.bf16 %v344
    %v409 = vunpack.c.l.bf16 %v345
    %v410 = vunpack.c.l.bf16 %v346
    %v411 = vunpack.c.l.bf16 %v347
    %v412 = vunpack.c.l.bf16 %v348
    %v413 = vunpack.c.l.bf16 %v349
    %v414 = vunpack.c.l.bf16 %v350
    %v415 = vunpack.c.l.bf16 %v351
    %v416 = vunpack.c.l.bf16 %v352
    %v417 = vunpack.c.l.bf16 %v353
    %v418 = vunpack.c.l.bf16 %v354
    %v419 = vunpack.c.l.bf16 %v355
    %v420 = vunpack.c.l.bf16 %v356
    %v421 = vunpack.c.l.bf16 %v357
    %v422 = vld [vmem:[%s4] sm:$0x1]
    %v424 = vlaneseq
    %v425 = vshrl.u32 %v424, 7
    %v426 = vsub.s32 0, %v425
    %v427 = vrot.slane %v422, %v426
    %v429 = vmul.f32 %v358, %v427
    %v430 = vmul.f32 %v359, %v427
    %v431 = vmul.f32 %v360, %v427
    %v432 = vmul.f32 %v361, %v427
    %v433 = vmul.f32 %v362, %v427
    %v434 = vmul.f32 %v363, %v427
    %v435 = vmul.f32 %v364, %v427
    %v436 = vmul.f32 %v365, %v427
    %v437 = vmul.f32 %v366, %v427
    %v438 = vmul.f32 %v367, %v427
    %v439 = vmul.f32 %v368, %v427
    %v440 = vmul.f32 %v369, %v427
    %v441 = vmul.f32 %v370, %v427
    %v442 = vmul.f32 %v371, %v427
    %v443 = vmul.f32 %v372, %v427
    %v444 = vmul.f32 %v373, %v427
    %v445 = vmul.f32 %v374, %v427
    %v446 = vmul.f32 %v375, %v427
    %v447 = vmul.f32 %v376, %v427
    %v448 = vmul.f32 %v377, %v427
    %v449 = vmul.f32 %v378, %v427
    %v450 = vmul.f32 %v379, %v427
    %v451 = vmul.f32 %v380, %v427
    %v452 = vmul.f32 %v381, %v427
    %v453 = vmul.f32 %v382, %v427
    %v454 = vmul.f32 %v383, %v427
    %v455 = vmul.f32 %v384, %v427
    %v456 = vmul.f32 %v385, %v427
    %v457 = vmul.f32 %v386, %v427
    %v458 = vmul.f32 %v387, %v427
    %v459 = vmul.f32 %v388, %v427
    %v460 = vmul.f32 %v389, %v427
    %v461 = vmul.f32 %v390, %v427
    %v462 = vmul.f32 %v391, %v427
    %v463 = vmul.f32 %v392, %v427
    %v464 = vmul.f32 %v393, %v427
    %v465 = vmul.f32 %v394, %v427
    %v466 = vmul.f32 %v395, %v427
    %v467 = vmul.f32 %v396, %v427
    %v468 = vmul.f32 %v397, %v427
    %v469 = vmul.f32 %v398, %v427
    %v470 = vmul.f32 %v399, %v427
    %v471 = vmul.f32 %v400, %v427
    %v472 = vmul.f32 %v401, %v427
    %v473 = vmul.f32 %v402, %v427
    %v474 = vmul.f32 %v403, %v427
    %v475 = vmul.f32 %v404, %v427
    %v476 = vmul.f32 %v405, %v427
    %v477 = vmul.f32 %v406, %v427
    %v478 = vmul.f32 %v407, %v427
    %v479 = vmul.f32 %v408, %v427
    %v480 = vmul.f32 %v409, %v427
    %v481 = vmul.f32 %v410, %v427
    %v482 = vmul.f32 %v411, %v427
    %v483 = vmul.f32 %v412, %v427
    %v484 = vmul.f32 %v413, %v427
    %v485 = vmul.f32 %v414, %v427
    %v486 = vmul.f32 %v415, %v427
    %v487 = vmul.f32 %v416, %v427
    %v488 = vmul.f32 %v417, %v427
    %v489 = vmul.f32 %v418, %v427
    %v490 = vmul.f32 %v419, %v427
    %v491 = vmul.f32 %v420, %v427
    %v492 = vmul.f32 %v421, %v427
    %v493 = vld [vmem:[%s5] sm:$0x1]
    %v495 = vlaneseq
    %v496 = vshrl.u32 %v495, 7
    %v497 = vsub.s32 0, %v496
    %v498 = vrot.slane %v493, %v497
    %v500 = vadd.f32 %v429, %v498
    %v501 = vadd.f32 %v430, %v498
    %v502 = vadd.f32 %v431, %v498
    %v503 = vadd.f32 %v432, %v498
    %v504 = vadd.f32 %v433, %v498
    %v505 = vadd.f32 %v434, %v498
    %v506 = vadd.f32 %v435, %v498
    %v507 = vadd.f32 %v436, %v498
    %v508 = vadd.f32 %v437, %v498
    %v509 = vadd.f32 %v438, %v498
    %v510 = vadd.f32 %v439, %v498
    %v511 = vadd.f32 %v440, %v498
    %v512 = vadd.f32 %v441, %v498
    %v513 = vadd.f32 %v442, %v498
    %v514 = vadd.f32 %v443, %v498
    %v515 = vadd.f32 %v444, %v498
    %v516 = vadd.f32 %v445, %v498
    %v517 = vadd.f32 %v446, %v498
    %v518 = vadd.f32 %v447, %v498
    %v519 = vadd.f32 %v448, %v498
    %v520 = vadd.f32 %v449, %v498
    %v521 = vadd.f32 %v450, %v498
    %v522 = vadd.f32 %v451, %v498
    %v523 = vadd.f32 %v452, %v498
    %v524 = vadd.f32 %v453, %v498
    %v525 = vadd.f32 %v454, %v498
    %v526 = vadd.f32 %v455, %v498
    %v527 = vadd.f32 %v456, %v498
    %v528 = vadd.f32 %v457, %v498
    %v529 = vadd.f32 %v458, %v498
    %v530 = vadd.f32 %v459, %v498
    %v531 = vadd.f32 %v460, %v498
    %v532 = vadd.f32 %v461, %v498
    %v533 = vadd.f32 %v462, %v498
    %v534 = vadd.f32 %v463, %v498
    %v535 = vadd.f32 %v464, %v498
    %v536 = vadd.f32 %v465, %v498
    %v537 = vadd.f32 %v466, %v498
    %v538 = vadd.f32 %v467, %v498
    %v539 = vadd.f32 %v468, %v498
    %v540 = vadd.f32 %v469, %v498
    %v541 = vadd.f32 %v470, %v498
    %v542 = vadd.f32 %v471, %v498
    %v543 = vadd.f32 %v472, %v498
    %v544 = vadd.f32 %v473, %v498
    %v545 = vadd.f32 %v474, %v498
    %v546 = vadd.f32 %v475, %v498
    %v547 = vadd.f32 %v476, %v498
    %v548 = vadd.f32 %v477, %v498
    %v549 = vadd.f32 %v478, %v498
    %v550 = vadd.f32 %v479, %v498
    %v551 = vadd.f32 %v480, %v498
    %v552 = vadd.f32 %v481, %v498
    %v553 = vadd.f32 %v482, %v498
    %v554 = vadd.f32 %v483, %v498
    %v555 = vadd.f32 %v484, %v498
    %v556 = vadd.f32 %v485, %v498
    %v557 = vadd.f32 %v486, %v498
    %v558 = vadd.f32 %v487, %v498
    %v559 = vadd.f32 %v488, %v498
    %v560 = vadd.f32 %v489, %v498
    %v561 = vadd.f32 %v490, %v498
    %v562 = vadd.f32 %v491, %v498
    %v563 = vadd.f32 %v492, %v498
    %v564 = vadd.f32 %v230, %v500
    %v565 = vadd.f32 %v231, %v501
    %v566 = vadd.f32 %v232, %v502
    %v567 = vadd.f32 %v233, %v503
    %v568 = vadd.f32 %v234, %v504
    %v569 = vadd.f32 %v235, %v505
    %v570 = vadd.f32 %v236, %v506
    %v571 = vadd.f32 %v237, %v507
    %v572 = vadd.f32 %v238, %v508
    %v573 = vadd.f32 %v239, %v509
    %v574 = vadd.f32 %v240, %v510
    %v575 = vadd.f32 %v241, %v511
    %v576 = vadd.f32 %v242, %v512
    %v577 = vadd.f32 %v243, %v513
    %v578 = vadd.f32 %v244, %v514
    %v579 = vadd.f32 %v245, %v515
    %v580 = vadd.f32 %v246, %v516
    %v581 = vadd.f32 %v247, %v517
    %v582 = vadd.f32 %v248, %v518
    %v583 = vadd.f32 %v249, %v519
    %v584 = vadd.f32 %v250, %v520
    %v585 = vadd.f32 %v251, %v521
    %v586 = vadd.f32 %v252, %v522
    %v587 = vadd.f32 %v253, %v523
    %v588 = vadd.f32 %v254, %v524
    %v589 = vadd.f32 %v255, %v525
    %v590 = vadd.f32 %v256, %v526
    %v591 = vadd.f32 %v257, %v527
    %v592 = vadd.f32 %v258, %v528
    %v593 = vadd.f32 %v259, %v529
    %v594 = vadd.f32 %v260, %v530
    %v595 = vadd.f32 %v261, %v531
    %v596 = vadd.f32 %v262, %v532
    %v597 = vadd.f32 %v263, %v533
    %v598 = vadd.f32 %v264, %v534
    %v599 = vadd.f32 %v265, %v535
    %v600 = vadd.f32 %v266, %v536
    %v601 = vadd.f32 %v267, %v537
    %v602 = vadd.f32 %v268, %v538
    %v603 = vadd.f32 %v269, %v539
    %v604 = vadd.f32 %v270, %v540
    %v605 = vadd.f32 %v271, %v541
    %v606 = vadd.f32 %v272, %v542
    %v607 = vadd.f32 %v273, %v543
    %v608 = vadd.f32 %v274, %v544
    %v609 = vadd.f32 %v275, %v545
    %v610 = vadd.f32 %v276, %v546
    %v611 = vadd.f32 %v277, %v547
    %v612 = vadd.f32 %v278, %v548
    %v613 = vadd.f32 %v279, %v549
    %v614 = vadd.f32 %v280, %v550
    %v615 = vadd.f32 %v281, %v551
    %v616 = vadd.f32 %v282, %v552
    %v617 = vadd.f32 %v283, %v553
    %v618 = vadd.f32 %v284, %v554
    %v619 = vadd.f32 %v285, %v555
    %v620 = vadd.f32 %v286, %v556
    %v621 = vadd.f32 %v287, %v557
    %v622 = vadd.f32 %v288, %v558
    %v623 = vadd.f32 %v289, %v559
    %v624 = vadd.f32 %v290, %v560
    %v625 = vadd.f32 %v291, %v561
    %v626 = vadd.f32 %v292, %v562
    %v627 = vadd.f32 %v293, %v563
    %v628 = vmax.f32 %v564, 0.0
    %v629 = vmax.f32 %v565, 0.0
    %v630 = vmax.f32 %v566, 0.0
    %v631 = vmax.f32 %v567, 0.0
    %v632 = vmax.f32 %v568, 0.0
    %v633 = vmax.f32 %v569, 0.0
    %v634 = vmax.f32 %v570, 0.0
    %v635 = vmax.f32 %v571, 0.0
    %v636 = vmax.f32 %v572, 0.0
    %v637 = vmax.f32 %v573, 0.0
    %v638 = vmax.f32 %v574, 0.0
    %v639 = vmax.f32 %v575, 0.0
    %v640 = vmax.f32 %v576, 0.0
    %v641 = vmax.f32 %v577, 0.0
    %v642 = vmax.f32 %v578, 0.0
    %v643 = vmax.f32 %v579, 0.0
    %v644 = vmax.f32 %v580, 0.0
    %v645 = vmax.f32 %v581, 0.0
    %v646 = vmax.f32 %v582, 0.0
    %v647 = vmax.f32 %v583, 0.0
    %v648 = vmax.f32 %v584, 0.0
    %v649 = vmax.f32 %v585, 0.0
    %v650 = vmax.f32 %v586, 0.0
    %v651 = vmax.f32 %v587, 0.0
    %v652 = vmax.f32 %v588, 0.0
    %v653 = vmax.f32 %v589, 0.0
    %v654 = vmax.f32 %v590, 0.0
    %v655 = vmax.f32 %v591, 0.0
    %v656 = vmax.f32 %v592, 0.0
    %v657 = vmax.f32 %v593, 0.0
    %v658 = vmax.f32 %v594, 0.0
    %v659 = vmax.f32 %v595, 0.0
    %v660 = vmax.f32 %v596, 0.0
    %v661 = vmax.f32 %v597, 0.0
    %v662 = vmax.f32 %v598, 0.0
    %v663 = vmax.f32 %v599, 0.0
    %v664 = vmax.f32 %v600, 0.0
    %v665 = vmax.f32 %v601, 0.0
    %v666 = vmax.f32 %v602, 0.0
    %v667 = vmax.f32 %v603, 0.0
    %v668 = vmax.f32 %v604, 0.0
    %v669 = vmax.f32 %v605, 0.0
    %v670 = vmax.f32 %v606, 0.0
    %v671 = vmax.f32 %v607, 0.0
    %v672 = vmax.f32 %v608, 0.0
    %v673 = vmax.f32 %v609, 0.0
    %v674 = vmax.f32 %v610, 0.0
    %v675 = vmax.f32 %v611, 0.0
    %v676 = vmax.f32 %v612, 0.0
    %v677 = vmax.f32 %v613, 0.0
    %v678 = vmax.f32 %v614, 0.0
    %v679 = vmax.f32 %v615, 0.0
    %v680 = vmax.f32 %v616, 0.0
    %v681 = vmax.f32 %v617, 0.0
    %v682 = vmax.f32 %v618, 0.0
    %v683 = vmax.f32 %v619, 0.0
    %v684 = vmax.f32 %v620, 0.0
    %v685 = vmax.f32 %v621, 0.0
    %v686 = vmax.f32 %v622, 0.0
    %v687 = vmax.f32 %v623, 0.0
    %v688 = vmax.f32 %v624, 0.0
    %v689 = vmax.f32 %v625, 0.0
    %v690 = vmax.f32 %v626, 0.0
    %v691 = vmax.f32 %v627, 0.0
    %692 = vst [vmem:[#allocation2] sm:$0xff] %v628
    %693 = vst [vmem:[#allocation2 + $0x8] sm:$0xff] %v629
    %694 = vst [vmem:[#allocation2 + $0x10] sm:$0xff] %v630
    %695 = vst [vmem:[#allocation2 + $0x18] sm:$0xff] %v631
    %696 = vst [vmem:[#allocation2 + $0x20] sm:$0xff] %v632
    %697 = vst [vmem:[#allocation2 + $0x28] sm:$0xff] %v633
    %698 = vst [vmem:[#allocation2 + $0x30] sm:$0xff] %v634
    %699 = vst [vmem:[#allocation2 + $0x38] sm:$0xff] %v635
    %700 = vst [vmem:[#allocation2 + $0x40] sm:$0xff] %v636
    %701 = vst [vmem:[#allocation2 + $0x48] sm:$0xff] %v637
    %702 = vst [vmem:[#allocation2 + $0x50] sm:$0xff] %v638
    %703 = vst [vmem:[#allocation2 + $0x58] sm:$0xff] %v639
    %704 = vst [vmem:[#allocation2 + $0x60] sm:$0xff] %v640
    %705 = vst [vmem:[#allocation2 + $0x68] sm:$0xff] %v641
    %706 = vst [vmem:[#allocation2 + $0x70] sm:$0xff] %v642
    %707 = vst [vmem:[#allocation2 + $0x78] sm:$0xff] %v643
    %708 = vst [vmem:[#allocation2 + $0x80] sm:$0xff] %v644
    %709 = vst [vmem:[#allocation2 + $0x88] sm:$0xff] %v645
    %710 = vst [vmem:[#allocation2 + $0x90] sm:$0xff] %v646
    %711 = vst [vmem:[#allocation2 + $0x98] sm:$0xff] %v647
    %712 = vst [vmem:[#allocation2 + $0xa0] sm:$0xff] %v648
    %713 = vst [vmem:[#allocation2 + $0xa8] sm:$0xff] %v649
    %714 = vst [vmem:[#allocation2 + $0xb0] sm:$0xff] %v650
    %715 = vst [vmem:[#allocation2 + $0xb8] sm:$0xff] %v651
    %716 = vst [vmem:[#allocation2 + $0xc0] sm:$0xff] %v652
    %717 = vst [vmem:[#allocation2 + $0xc8] sm:$0xff] %v653
    %718 = vst [vmem:[#allocation2 + $0xd0] sm:$0xff] %v654
    %719 = vst [vmem:[#allocation2 + $0xd8] sm:$0xff] %v655
    %720 = vst [vmem:[#allocation2 + $0xe0] sm:$0xff] %v656
    %721 = vst [vmem:[#allocation2 + $0xe8] sm:$0xff] %v657
    %722 = vst [vmem:[#allocation2 + $0xf0] sm:$0xff] %v658
    %723 = vst [vmem:[#allocation2 + $0xf8] sm:$0xff] %v659
    %724 = vst [vmem:[#allocation2 + $0x100] sm:$0xff] %v660
    %725 = vst [vmem:[#allocation2 + $0x108] sm:$0xff] %v661
    %726 = vst [vmem:[#allocation2 + $0x110] sm:$0xff] %v662
    %727 = vst [vmem:[#allocation2 + $0x118] sm:$0xff] %v663
    %728 = vst [vmem:[#allocation2 + $0x120] sm:$0xff] %v664
    %729 = vst [vmem:[#allocation2 + $0x128] sm:$0xff] %v665
    %730 = vst [vmem:[#allocation2 + $0x130] sm:$0xff] %v666
    %731 = vst [vmem:[#allocation2 + $0x138] sm:$0xff] %v667
    %732 = vst [vmem:[#allocation2 + $0x140] sm:$0xff] %v668
    %733 = vst [vmem:[#allocation2 + $0x148] sm:$0xff] %v669
    %734 = vst [vmem:[#allocation2 + $0x150] sm:$0xff] %v670
    %735 = vst [vmem:[#allocation2 + $0x158] sm:$0xff] %v671
    %736 = vst [vmem:[#allocation2 + $0x160] sm:$0xff] %v672
    %737 = vst [vmem:[#allocation2 + $0x168] sm:$0xff] %v673
    %738 = vst [vmem:[#allocation2 + $0x170] sm:$0xff] %v674
    %739 = vst [vmem:[#allocation2 + $0x178] sm:$0xff] %v675
    %740 = vst [vmem:[#allocation2 + $0x180] sm:$0xff] %v676
    %741 = vst [vmem:[#allocation2 + $0x188] sm:$0xff] %v677
    %742 = vst [vmem:[#allocation2 + $0x190] sm:$0xff] %v678
    %743 = vst [vmem:[#allocation2 + $0x198] sm:$0xff] %v679
    %744 = vst [vmem:[#allocation2 + $0x1a0] sm:$0xff] %v680
    %745 = vst [vmem:[#allocation2 + $0x1a8] sm:$0xff] %v681
    %746 = vst [vmem:[#allocation2 + $0x1b0] sm:$0xff] %v682
    %747 = vst [vmem:[#allocation2 + $0x1b8] sm:$0xff] %v683
    %748 = vst [vmem:[#allocation2 + $0x1c0] sm:$0xff] %v684
    %749 = vst [vmem:[#allocation2 + $0x1c8] sm:$0xff] %v685
    %750 = vst [vmem:[#allocation2 + $0x1d0] sm:$0xff] %v686
    %751 = vst [vmem:[#allocation2 + $0x1d8] sm:$0xff] %v687
    %752 = vst [vmem:[#allocation2 + $0x1e0] sm:$0xff] %v688
    %753 = vst [vmem:[#allocation2 + $0x1e8] sm:$0xff] %v689
    %754 = vst [vmem:[#allocation2 + $0x1f0] sm:$0xff] %v690
    %755 = vst [vmem:[#allocation2 + $0x1f8] sm:$0xff] %v691
    // Predicated region
    $region26: #{bottleneck_psp_forward.13} parent=1 // pred_check
      _
    $region27: #{bottleneck_psp_forward.13} parent=1 // pred_check_branch
      %757 = sbr.rel (0) target = $region29
    $region28: #{bottleneck_psp_forward.13} parent=1 // pred_region
      %s759 = ssub.s32 8192, 8192
      %760 = vsyncadd [#allocation3], %s759
      %s761 = sshll.u32 [#allocation2], 4
      %s762 = int_to_ptr.vmem [resolvable:$true] %s761
      %767 = dma.vmem_to_hbm [thread:$0]  %s762, 8192, %s6, [#allocation3], 128, 128, 8
    $region29: #{bottleneck_psp_forward.13} parent=1 // pred_fallthru
      _
    // Predicated region
    $region30: #{bottleneck_psp_forward.13} parent=1 // pred_check
      _
    $region31: #{bottleneck_psp_forward.13} parent=1 // pred_check_branch
      %769 = sbr.rel (0) target = $region33
    $region32: #{bottleneck_psp_forward.13} parent=1 // pred_region
      %770 = dma.done [#allocation3], 8192
    $region33: #{bottleneck_psp_forward.13} parent=1 // pred_fallthru
      _
    %771 = vsyncpa [#allocation3], 1

</llo_original>
